<compile_context>
chip_gen: v5e
topology: v5e:2x2
jax: 0.10.0
libtpu: 0.0.40
codegen_flags: <defaults>
</compile_context>

<pallas_src>
import jax
import jax.numpy as jnp
import numpy as np
from jax.experimental import pallas as pl
from jax.experimental.pallas import tpu as pltpu


def _sigmoid_full(x):
    # single-EUP sigmoid: 1/(1+exp(-x)) == 0.5*tanh(0.5*x) + 0.5
    return 0.5 * jnp.tanh(0.5 * x) + 0.5


def lstm_forward_kernel(x_ref, w1_ref, b1_ref, wih_ref, whh_ref, bias_ref,
                        out_ref):
    """Whole forward pass on one TensorCore (everything resident in VMEM).

    x_ref    : (S*B, Din)  time-major flattened input slab
    w1_ref   : (Din, F)    first Linear weight (transposed)
    b1_ref   : (1, F)      first Linear bias
    wih_ref  : (L, F, 4H)  LSTM input weights (transposed), gate order i,f,g,o
    whh_ref  : (L, H, 4H)  LSTM hidden weights (transposed)
    bias_ref : (L, 1, 4H)  pre-summed bih + bhh
    out_ref  : (B, H)
    """
    SB = x_ref.shape[0]
    B = out_ref.shape[0]
    S = SB // B
    L, _, H4 = wih_ref.shape
    H = H4 // 4

    # first Linear + ReLU for all timesteps at once (one MXU matmul)
    seq = jnp.maximum(
        jnp.dot(x_ref[...], w1_ref[...], preferred_element_type=jnp.float32)
        + b1_ref[...], 0.0)                                   # (S*B, F)

    h_last = None
    # stacked LSTM with zero initial (h, c) -- matches init_hidden()
    for layer in range(L):
        wih = wih_ref[layer]                                  # (F or H, 4H)
        whh = whh_ref[layer]                                  # (H, 4H)
        bias = bias_ref[layer]                                # (1, 4H)

        # time-invariant input projection hoisted off the recurrent chain
        inproj = jnp.dot(seq, wih,
                         preferred_element_type=jnp.float32) + bias  # (S*B, 4H)

        h = jnp.zeros((B, H), jnp.float32)
        c = jnp.zeros((B, H), jnp.float32)
        new_rows = []
        for t in range(S):
            gates = (inproj[t * B:(t + 1) * B, :]
                     + jnp.dot(h, whh, preferred_element_type=jnp.float32))
            # full-width (B, 4H) transcendentals, then lane-slice
            sig = _sigmoid_full(gates)
            tg = jnp.tanh(gates)
            i_g = sig[:, 0 * H:1 * H]
            f_g = sig[:, 1 * H:2 * H]
            g_g = tg[:, 2 * H:3 * H]
            o_g = sig[:, 3 * H:4 * H]
            c = f_g * c + i_g * g_g
            h = o_g * jnp.tanh(c)
            new_rows.append(h)
        h_last = h
        if layer + 1 < L:
            # feed next layer's hoisted matmul as one (S*B, H) slab
            seq = jnp.concatenate(new_rows, axis=0)

    # x[:, -1, :] followed by the activation (ReLU)
    out_ref[...] = jnp.maximum(h_last, 0.0)


def lstm_forward(x_bsd, w1t, b1, wih, whh, bih, bhh):
    """Wrapper: batch-first input (B, S, Din) -> (B, H)."""
    B, S, Din = x_bsd.shape
    H = whh.shape[1]
    # glue (XLA side): time-major, flattened to a single 2-D slab
    x_slab = jnp.transpose(x_bsd, (1, 0, 2)).reshape(S * B, Din)
    bias = bih + bhh                                          # (L, 1, 4H)
    vmem = pl.BlockSpec(memory_space=pltpu.MemorySpace.VMEM)
    # TODO(synk): if many independent sequences are available, add a batch grid
    # axis ("parallel") to fill MXU lanes / both v7x TensorCores; at B=8 the
    # kernel is latency-bound and a gridless single call is the right shape.
    return pl.pallas_call(
        lstm_forward_kernel,
        out_shape=jax.ShapeDtypeStruct((B, H), jnp.float32),
        in_specs=[vmem] * 6,
        out_specs=vmem,
    )(x_slab, w1t, b1.reshape(1, -1), wih, whh, bias)


def lstm_forward_ref(x, w1t, b1, wih, whh, bih, bhh):
    """Pure-JAX reference mirroring torch semantics."""
    B, S, _ = x.shape
    L, _, H4 = wih.shape
    H = H4 // 4
    seq = jnp.maximum(x @ w1t + b1, 0.0)                      # (B, S, F)
    for layer in range(L):
        h = jnp.zeros((B, H), jnp.float32)
        c = jnp.zeros((B, H), jnp.float32)
        outs = []
        for t in range(S):
            gates = seq[:, t] @ wih[layer] + h @ whh[layer] \
                    + bih[layer] + bhh[layer]
            i_g = jax.nn.sigmoid(gates[:, 0 * H:1 * H])
            f_g = jax.nn.sigmoid(gates[:, 1 * H:2 * H])
            g_g = jnp.tanh(gates[:, 2 * H:3 * H])
            o_g = jax.nn.sigmoid(gates[:, 3 * H:4 * H])
            c = f_g * c + i_g * g_g
            h = o_g * jnp.tanh(c)
            outs.append(h)
        seq = jnp.stack(outs, axis=1)
    return jnp.maximum(seq[:, -1, :], 0.0)


def init_params(key, din, feat, hidden, num_layers):
    """Deterministic parameter init (PyTorch-style uniform bounds)."""
    assert feat == hidden, "this script stacks LSTM layer weights (F == H)"
    ks = jax.random.split(key, 2 + 4 * num_layers)
    b_lin = 1.0 / (din ** 0.5)
    w1t = jax.random.uniform(ks[0], (din, feat), jnp.float32, -b_lin, b_lin)
    b1 = jax.random.uniform(ks[1], (feat,), jnp.float32, -b_lin, b_lin)
    b_lstm = 1.0 / (hidden ** 0.5)
    wih, whh, bih, bhh = [], [], [], []
    for layer in range(num_layers):
        in_l = feat if layer == 0 else hidden
        kk = ks[2 + 4 * layer: 6 + 4 * layer]
        wih.append(jax.random.uniform(kk[0], (in_l, 4 * hidden), jnp.float32,
                                      -b_lstm, b_lstm))
        whh.append(jax.random.uniform(kk[1], (hidden, 4 * hidden), jnp.float32,
                                      -b_lstm, b_lstm))
        bih.append(jax.random.uniform(kk[2], (1, 4 * hidden), jnp.float32,
                                      -b_lstm, b_lstm))
        bhh.append(jax.random.uniform(kk[3], (1, 4 * hidden), jnp.float32,
                                      -b_lstm, b_lstm))
    return (w1t, b1, jnp.stack(wih), jnp.stack(whh),
            jnp.stack(bih), jnp.stack(bhh))


if __name__ == "__main__":
    # MALA-style params: layer_sizes = [16, 32, 32], num_hidden_layers = 4,
    # mini_batch_size = 8, layer_activations = ['ReLU'], bidirection = False.
    B, S = 8, 4           # batch, seq_len (== num_hidden_layers)
    DIN, F, H = 16, 32, 32
    L = S                 # number of stacked LSTM layers == num_hidden_layers

    key = jax.random.PRNGKey(0)
    kx, kp = jax.random.split(key)
    x = jax.random.normal(kx, (B, S, DIN), jnp.float32)
    params = init_params(kp, DIN, F, H, L)

    out = jax.block_until_ready(lstm_forward(x, *params))
    ref = jax.block_until_ready(lstm_forward_ref(x, *params))
    np.testing.assert_allclose(np.asarray(out), np.asarray(ref),
                               rtol=1e-5, atol=1e-5)
    assert out.shape == (B, H)
    print("KERNEL_OK")
</pallas_src>

<mosaic_0001>
module attributes {stable_mosaic.version = 11 : i64} {
  func.func @lstm_forward_kernel(%arg0: memref<32x16xf32, #tpu.memory_space<vmem>>, %arg1: memref<16x32xf32, #tpu.memory_space<vmem>>, %arg2: memref<1x32xf32, #tpu.memory_space<vmem>>, %arg3: memref<4x32x128xf32, #tpu.memory_space<vmem>>, %arg4: memref<4x32x128xf32, #tpu.memory_space<vmem>>, %arg5: memref<4x1x128xf32, #tpu.memory_space<vmem>>, %arg6: memref<8x32xf32, #tpu.memory_space<vmem>>) attributes {dimension_semantics = [], scalar_prefetch = 0 : i64, scratch_operands = 0 : i64, tpu.core_type = #tpu.core_type<tc>} {
    %c0 = arith.constant 0 : index
    %c0_0 = arith.constant 0 : index
    %0 = vector.load %arg0[%c0, %c0_0] : memref<32x16xf32, #tpu.memory_space<vmem>>, vector<32x16xf32>
    %c0_1 = arith.constant 0 : index
    %c0_2 = arith.constant 0 : index
    %1 = vector.load %arg1[%c0_1, %c0_2] : memref<16x32xf32, #tpu.memory_space<vmem>>, vector<16x32xf32>
    %cst = arith.constant dense<0.000000e+00> : vector<32x32xf32>
    %2 = tpu.matmul %0, %1, %cst {dimension_numbers = #tpu.dot_dimension_numbers<[1], [0], [0], [1], [0, 0, 1, 1], [], []>} : vector<32x16xf32>, vector<16x32xf32>, vector<32x32xf32> -> vector<32x32xf32>
    %c0_3 = arith.constant 0 : index
    %c0_4 = arith.constant 0 : index
    %3 = vector.load %arg2[%c0_3, %c0_4] : memref<1x32xf32, #tpu.memory_space<vmem>>, vector<1x32xf32>
    %4 = vector.broadcast %3 : vector<1x32xf32> to vector<32x32xf32>
    %5 = arith.addf %2, %4 : vector<32x32xf32>
    %cst_5 = arith.constant 0.000000e+00 : f32
    %6 = vector.broadcast %cst_5 : f32 to vector<32x32xf32>
    %7 = arith.maximumf %5, %6 : vector<32x32xf32>
    %c0_6 = arith.constant 0 : index
    %c0_7 = arith.constant 0 : index
    %c0_8 = arith.constant 0 : index
    %8 = vector.load %arg3[%c0_6, %c0_7, %c0_8] : memref<4x32x128xf32, #tpu.memory_space<vmem>>, vector<1x32x128xf32>
    %9 = vector.shape_cast %8 : vector<1x32x128xf32> to vector<32x128xf32>
    %c0_9 = arith.constant 0 : index
    %c0_10 = arith.constant 0 : index
    %c0_11 = arith.constant 0 : index
    %10 = vector.load %arg4[%c0_9, %c0_10, %c0_11] : memref<4x32x128xf32, #tpu.memory_space<vmem>>, vector<1x32x128xf32>
    %11 = vector.shape_cast %10 : vector<1x32x128xf32> to vector<32x128xf32>
    %c0_12 = arith.constant 0 : index
    %c0_13 = arith.constant 0 : index
    %c0_14 = arith.constant 0 : index
    %12 = vector.load %arg5[%c0_12, %c0_13, %c0_14] : memref<4x1x128xf32, #tpu.memory_space<vmem>>, vector<1x1x128xf32>
    %13 = vector.shape_cast %12 : vector<1x1x128xf32> to vector<1x128xf32>
    %cst_15 = arith.constant dense<0.000000e+00> : vector<32x128xf32>
    %14 = tpu.matmul %7, %9, %cst_15 {dimension_numbers = #tpu.dot_dimension_numbers<[1], [0], [0], [1], [0, 0, 1, 1], [], []>} : vector<32x32xf32>, vector<32x128xf32>, vector<32x128xf32> -> vector<32x128xf32>
    %15 = vector.broadcast %13 : vector<1x128xf32> to vector<32x128xf32>
    %16 = arith.addf %14, %15 : vector<32x128xf32>
    %cst_16 = arith.constant 0.000000e+00 : f32
    %17 = vector.broadcast %cst_16 : f32 to vector<8x32xf32>
    %cst_17 = arith.constant 0.000000e+00 : f32
    %18 = vector.broadcast %cst_17 : f32 to vector<8x32xf32>
    %19 = vector.extract_strided_slice %16 {offsets = [0, 0], sizes = [8, 128], strides = [1, 1]} : vector<32x128xf32> to vector<8x128xf32>
    %cst_18 = arith.constant dense<0.000000e+00> : vector<8x128xf32>
    %20 = tpu.matmul %17, %11, %cst_18 {dimension_numbers = #tpu.dot_dimension_numbers<[1], [0], [0], [1], [0, 0, 1, 1], [], []>} : vector<8x32xf32>, vector<32x128xf32>, vector<8x128xf32> -> vector<8x128xf32>
    %21 = arith.addf %19, %20 : vector<8x128xf32>
    %cst_19 = arith.constant 5.000000e-01 : f32
    %22 = vector.broadcast %cst_19 : f32 to vector<8x128xf32>
    %23 = arith.mulf %22, %21 : vector<8x128xf32>
    %24 = math.tanh %23 : vector<8x128xf32>
    %cst_20 = arith.constant 5.000000e-01 : f32
    %25 = vector.broadcast %cst_20 : f32 to vector<8x128xf32>
    %26 = arith.mulf %25, %24 : vector<8x128xf32>
    %cst_21 = arith.constant 5.000000e-01 : f32
    %27 = vector.broadcast %cst_21 : f32 to vector<8x128xf32>
    %28 = arith.addf %26, %27 : vector<8x128xf32>
    %29 = math.tanh %21 : vector<8x128xf32>
    %30 = vector.extract_strided_slice %28 {offsets = [0, 0], sizes = [8, 32], strides = [1, 1]} : vector<8x128xf32> to vector<8x32xf32>
    %31 = vector.extract_strided_slice %28 {offsets = [0, 32], sizes = [8, 32], strides = [1, 1]} : vector<8x128xf32> to vector<8x32xf32>
    %32 = vector.extract_strided_slice %29 {offsets = [0, 64], sizes = [8, 32], strides = [1, 1]} : vector<8x128xf32> to vector<8x32xf32>
    %33 = vector.extract_strided_slice %28 {offsets = [0, 96], sizes = [8, 32], strides = [1, 1]} : vector<8x128xf32> to vector<8x32xf32>
    %34 = arith.mulf %31, %18 : vector<8x32xf32>
    %35 = arith.mulf %30, %32 : vector<8x32xf32>
    %36 = arith.addf %34, %35 : vector<8x32xf32>
    %37 = math.tanh %36 : vector<8x32xf32>
    %38 = arith.mulf %33, %37 : vector<8x32xf32>
    %39 = vector.extract_strided_slice %16 {offsets = [8, 0], sizes = [8, 128], strides = [1, 1]} : vector<32x128xf32> to vector<8x128xf32>
    %cst_22 = arith.constant dense<0.000000e+00> : vector<8x128xf32>
    %40 = tpu.matmul %38, %11, %cst_22 {dimension_numbers = #tpu.dot_dimension_numbers<[1], [0], [0], [1], [0, 0, 1, 1], [], []>} : vector<8x32xf32>, vector<32x128xf32>, vector<8x128xf32> -> vector<8x128xf32>
    %41 = arith.addf %39, %40 : vector<8x128xf32>
    %cst_23 = arith.constant 5.000000e-01 : f32
    %42 = vector.broadcast %cst_23 : f32 to vector<8x128xf32>
    %43 = arith.mulf %42, %41 : vector<8x128xf32>
    %44 = math.tanh %43 : vector<8x128xf32>
    %cst_24 = arith.constant 5.000000e-01 : f32
    %45 = vector.broadcast %cst_24 : f32 to vector<8x128xf32>
    %46 = arith.mulf %45, %44 : vector<8x128xf32>
    %cst_25 = arith.constant 5.000000e-01 : f32
    %47 = vector.broadcast %cst_25 : f32 to vector<8x128xf32>
    %48 = arith.addf %46, %47 : vector<8x128xf32>
    %49 = math.tanh %41 : vector<8x128xf32>
    %50 = vector.extract_strided_slice %48 {offsets = [0, 0], sizes = [8, 32], strides = [1, 1]} : vector<8x128xf32> to vector<8x32xf32>
    %51 = vector.extract_strided_slice %48 {offsets = [0, 32], sizes = [8, 32], strides = [1, 1]} : vector<8x128xf32> to vector<8x32xf32>
    %52 = vector.extract_strided_slice %49 {offsets = [0, 64], sizes = [8, 32], strides = [1, 1]} : vector<8x128xf32> to vector<8x32xf32>
    %53 = vector.extract_strided_slice %48 {offsets = [0, 96], sizes = [8, 32], strides = [1, 1]} : vector<8x128xf32> to vector<8x32xf32>
    %54 = arith.mulf %51, %36 : vector<8x32xf32>
    %55 = arith.mulf %50, %52 : vector<8x32xf32>
    %56 = arith.addf %54, %55 : vector<8x32xf32>
    %57 = math.tanh %56 : vector<8x32xf32>
    %58 = arith.mulf %53, %57 : vector<8x32xf32>
    %59 = vector.extract_strided_slice %16 {offsets = [16, 0], sizes = [8, 128], strides = [1, 1]} : vector<32x128xf32> to vector<8x128xf32>
    %cst_26 = arith.constant dense<0.000000e+00> : vector<8x128xf32>
    %60 = tpu.matmul %58, %11, %cst_26 {dimension_numbers = #tpu.dot_dimension_numbers<[1], [0], [0], [1], [0, 0, 1, 1], [], []>} : vector<8x32xf32>, vector<32x128xf32>, vector<8x128xf32> -> vector<8x128xf32>
    %61 = arith.addf %59, %60 : vector<8x128xf32>
    %cst_27 = arith.constant 5.000000e-01 : f32
    %62 = vector.broadcast %cst_27 : f32 to vector<8x128xf32>
    %63 = arith.mulf %62, %61 : vector<8x128xf32>
    %64 = math.tanh %63 : vector<8x128xf32>
    %cst_28 = arith.constant 5.000000e-01 : f32
    %65 = vector.broadcast %cst_28 : f32 to vector<8x128xf32>
    %66 = arith.mulf %65, %64 : vector<8x128xf32>
    %cst_29 = arith.constant 5.000000e-01 : f32
    %67 = vector.broadcast %cst_29 : f32 to vector<8x128xf32>
    %68 = arith.addf %66, %67 : vector<8x128xf32>
    %69 = math.tanh %61 : vector<8x128xf32>
    %70 = vector.extract_strided_slice %68 {offsets = [0, 0], sizes = [8, 32], strides = [1, 1]} : vector<8x128xf32> to vector<8x32xf32>
    %71 = vector.extract_strided_slice %68 {offsets = [0, 32], sizes = [8, 32], strides = [1, 1]} : vector<8x128xf32> to vector<8x32xf32>
    %72 = vector.extract_strided_slice %69 {offsets = [0, 64], sizes = [8, 32], strides = [1, 1]} : vector<8x128xf32> to vector<8x32xf32>
    %73 = vector.extract_strided_slice %68 {offsets = [0, 96], sizes = [8, 32], strides = [1, 1]} : vector<8x128xf32> to vector<8x32xf32>
    %74 = arith.mulf %71, %56 : vector<8x32xf32>
    %75 = arith.mulf %70, %72 : vector<8x32xf32>
    %76 = arith.addf %74, %75 : vector<8x32xf32>
    %77 = math.tanh %76 : vector<8x32xf32>
    %78 = arith.mulf %73, %77 : vector<8x32xf32>
    %79 = vector.extract_strided_slice %16 {offsets = [24, 0], sizes = [8, 128], strides = [1, 1]} : vector<32x128xf32> to vector<8x128xf32>
    %cst_30 = arith.constant dense<0.000000e+00> : vector<8x128xf32>
    %80 = tpu.matmul %78, %11, %cst_30 {dimension_numbers = #tpu.dot_dimension_numbers<[1], [0], [0], [1], [0, 0, 1, 1], [], []>} : vector<8x32xf32>, vector<32x128xf32>, vector<8x128xf32> -> vector<8x128xf32>
    %81 = arith.addf %79, %80 : vector<8x128xf32>
    %cst_31 = arith.constant 5.000000e-01 : f32
    %82 = vector.broadcast %cst_31 : f32 to vector<8x128xf32>
    %83 = arith.mulf %82, %81 : vector<8x128xf32>
    %84 = math.tanh %83 : vector<8x128xf32>
    %cst_32 = arith.constant 5.000000e-01 : f32
    %85 = vector.broadcast %cst_32 : f32 to vector<8x128xf32>
    %86 = arith.mulf %85, %84 : vector<8x128xf32>
    %cst_33 = arith.constant 5.000000e-01 : f32
    %87 = vector.broadcast %cst_33 : f32 to vector<8x128xf32>
    %88 = arith.addf %86, %87 : vector<8x128xf32>
    %89 = math.tanh %81 : vector<8x128xf32>
    %90 = vector.extract_strided_slice %88 {offsets = [0, 0], sizes = [8, 32], strides = [1, 1]} : vector<8x128xf32> to vector<8x32xf32>
    %91 = vector.extract_strided_slice %88 {offsets = [0, 32], sizes = [8, 32], strides = [1, 1]} : vector<8x128xf32> to vector<8x32xf32>
    %92 = vector.extract_strided_slice %89 {offsets = [0, 64], sizes = [8, 32], strides = [1, 1]} : vector<8x128xf32> to vector<8x32xf32>
    %93 = vector.extract_strided_slice %88 {offsets = [0, 96], sizes = [8, 32], strides = [1, 1]} : vector<8x128xf32> to vector<8x32xf32>
    %94 = arith.mulf %91, %76 : vector<8x32xf32>
    %95 = arith.mulf %90, %92 : vector<8x32xf32>
    %96 = arith.addf %94, %95 : vector<8x32xf32>
    %97 = math.tanh %96 : vector<8x32xf32>
    %98 = arith.mulf %93, %97 : vector<8x32xf32>
    %99 = tpu.concatenate %38, %58, %78, %98 in 0 : vector<8x32xf32>, vector<8x32xf32>, vector<8x32xf32>, vector<8x32xf32> -> vector<32x32xf32>
    %c1 = arith.constant 1 : index
    %c0_34 = arith.constant 0 : index
    %c0_35 = arith.constant 0 : index
    %100 = vector.load %arg3[%c1, %c0_34, %c0_35] : memref<4x32x128xf32, #tpu.memory_space<vmem>>, vector<1x32x128xf32>
    %101 = vector.shape_cast %100 : vector<1x32x128xf32> to vector<32x128xf32>
    %c1_36 = arith.constant 1 : index
    %c0_37 = arith.constant 0 : index
    %c0_38 = arith.constant 0 : index
    %102 = vector.load %arg4[%c1_36, %c0_37, %c0_38] : memref<4x32x128xf32, #tpu.memory_space<vmem>>, vector<1x32x128xf32>
    %103 = vector.shape_cast %102 : vector<1x32x128xf32> to vector<32x128xf32>
    %c1_39 = arith.constant 1 : index
    %c0_40 = arith.constant 0 : index
    %c0_41 = arith.constant 0 : index
    %104 = vector.load %arg5[%c1_39, %c0_40, %c0_41] : memref<4x1x128xf32, #tpu.memory_space<vmem>>, vector<1x1x128xf32>
    %105 = vector.shape_cast %104 : vector<1x1x128xf32> to vector<1x128xf32>
    %cst_42 = arith.constant dense<0.000000e+00> : vector<32x128xf32>
    %106 = tpu.matmul %99, %101, %cst_42 {dimension_numbers = #tpu.dot_dimension_numbers<[1], [0], [0], [1], [0, 0, 1, 1], [], []>} : vector<32x32xf32>, vector<32x128xf32>, vector<32x128xf32> -> vector<32x128xf32>
    %107 = vector.broadcast %105 : vector<1x128xf32> to vector<32x128xf32>
    %108 = arith.addf %106, %107 : vector<32x128xf32>
    %cst_43 = arith.constant 0.000000e+00 : f32
    %109 = vector.broadcast %cst_43 : f32 to vector<8x32xf32>
    %cst_44 = arith.constant 0.000000e+00 : f32
    %110 = vector.broadcast %cst_44 : f32 to vector<8x32xf32>
    %111 = vector.extract_strided_slice %108 {offsets = [0, 0], sizes = [8, 128], strides = [1, 1]} : vector<32x128xf32> to vector<8x128xf32>
    %cst_45 = arith.constant dense<0.000000e+00> : vector<8x128xf32>
    %112 = tpu.matmul %109, %103, %cst_45 {dimension_numbers = #tpu.dot_dimension_numbers<[1], [0], [0], [1], [0, 0, 1, 1], [], []>} : vector<8x32xf32>, vector<32x128xf32>, vector<8x128xf32> -> vector<8x128xf32>
    %113 = arith.addf %111, %112 : vector<8x128xf32>
    %cst_46 = arith.constant 5.000000e-01 : f32
    %114 = vector.broadcast %cst_46 : f32 to vector<8x128xf32>
    %115 = arith.mulf %114, %113 : vector<8x128xf32>
    %116 = math.tanh %115 : vector<8x128xf32>
    %cst_47 = arith.constant 5.000000e-01 : f32
    %117 = vector.broadcast %cst_47 : f32 to vector<8x128xf32>
    %118 = arith.mulf %117, %116 : vector<8x128xf32>
    %cst_48 = arith.constant 5.000000e-01 : f32
    %119 = vector.broadcast %cst_48 : f32 to vector<8x128xf32>
    %120 = arith.addf %118, %119 : vector<8x128xf32>
    %121 = math.tanh %113 : vector<8x128xf32>
    %122 = vector.extract_strided_slice %120 {offsets = [0, 0], sizes = [8, 32], strides = [1, 1]} : vector<8x128xf32> to vector<8x32xf32>
    %123 = vector.extract_strided_slice %120 {offsets = [0, 32], sizes = [8, 32], strides = [1, 1]} : vector<8x128xf32> to vector<8x32xf32>
    %124 = vector.extract_strided_slice %121 {offsets = [0, 64], sizes = [8, 32], strides = [1, 1]} : vector<8x128xf32> to vector<8x32xf32>
    %125 = vector.extract_strided_slice %120 {offsets = [0, 96], sizes = [8, 32], strides = [1, 1]} : vector<8x128xf32> to vector<8x32xf32>
    %126 = arith.mulf %123, %110 : vector<8x32xf32>
    %127 = arith.mulf %122, %124 : vector<8x32xf32>
    %128 = arith.addf %126, %127 : vector<8x32xf32>
    %129 = math.tanh %128 : vector<8x32xf32>
    %130 = arith.mulf %125, %129 : vector<8x32xf32>
    %131 = vector.extract_strided_slice %108 {offsets = [8, 0], sizes = [8, 128], strides = [1, 1]} : vector<32x128xf32> to vector<8x128xf32>
    %cst_49 = arith.constant dense<0.000000e+00> : vector<8x128xf32>
    %132 = tpu.matmul %130, %103, %cst_49 {dimension_numbers = #tpu.dot_dimension_numbers<[1], [0], [0], [1], [0, 0, 1, 1], [], []>} : vector<8x32xf32>, vector<32x128xf32>, vector<8x128xf32> -> vector<8x128xf32>
    %133 = arith.addf %131, %132 : vector<8x128xf32>
    %cst_50 = arith.constant 5.000000e-01 : f32
    %134 = vector.broadcast %cst_50 : f32 to vector<8x128xf32>
    %135 = arith.mulf %134, %133 : vector<8x128xf32>
    %136 = math.tanh %135 : vector<8x128xf32>
    %cst_51 = arith.constant 5.000000e-01 : f32
    %137 = vector.broadcast %cst_51 : f32 to vector<8x128xf32>
    %138 = arith.mulf %137, %136 : vector<8x128xf32>
    %cst_52 = arith.constant 5.000000e-01 : f32
    %139 = vector.broadcast %cst_52 : f32 to vector<8x128xf32>
    %140 = arith.addf %138, %139 : vector<8x128xf32>
    %141 = math.tanh %133 : vector<8x128xf32>
    %142 = vector.extract_strided_slice %140 {offsets = [0, 0], sizes = [8, 32], strides = [1, 1]} : vector<8x128xf32> to vector<8x32xf32>
    %143 = vector.extract_strided_slice %140 {offsets = [0, 32], sizes = [8, 32], strides = [1, 1]} : vector<8x128xf32> to vector<8x32xf32>
    %144 = vector.extract_strided_slice %141 {offsets = [0, 64], sizes = [8, 32], strides = [1, 1]} : vector<8x128xf32> to vector<8x32xf32>
    %145 = vector.extract_strided_slice %140 {offsets = [0, 96], sizes = [8, 32], strides = [1, 1]} : vector<8x128xf32> to vector<8x32xf32>
    %146 = arith.mulf %143, %128 : vector<8x32xf32>
    %147 = arith.mulf %142, %144 : vector<8x32xf32>
    %148 = arith.addf %146, %147 : vector<8x32xf32>
    %149 = math.tanh %148 : vector<8x32xf32>
    %150 = arith.mulf %145, %149 : vector<8x32xf32>
    %151 = vector.extract_strided_slice %108 {offsets = [16, 0], sizes = [8, 128], strides = [1, 1]} : vector<32x128xf32> to vector<8x128xf32>
    %cst_53 = arith.constant dense<0.000000e+00> : vector<8x128xf32>
    %152 = tpu.matmul %150, %103, %cst_53 {dimension_numbers = #tpu.dot_dimension_numbers<[1], [0], [0], [1], [0, 0, 1, 1], [], []>} : vector<8x32xf32>, vector<32x128xf32>, vector<8x128xf32> -> vector<8x128xf32>
    %153 = arith.addf %151, %152 : vector<8x128xf32>
    %cst_54 = arith.constant 5.000000e-01 : f32
    %154 = vector.broadcast %cst_54 : f32 to vector<8x128xf32>
    %155 = arith.mulf %154, %153 : vector<8x128xf32>
    %156 = math.tanh %155 : vector<8x128xf32>
    %cst_55 = arith.constant 5.000000e-01 : f32
    %157 = vector.broadcast %cst_55 : f32 to vector<8x128xf32>
    %158 = arith.mulf %157, %156 : vector<8x128xf32>
    %cst_56 = arith.constant 5.000000e-01 : f32
    %159 = vector.broadcast %cst_56 : f32 to vector<8x128xf32>
    %160 = arith.addf %158, %159 : vector<8x128xf32>
    %161 = math.tanh %153 : vector<8x128xf32>
    %162 = vector.extract_strided_slice %160 {offsets = [0, 0], sizes = [8, 32], strides = [1, 1]} : vector<8x128xf32> to vector<8x32xf32>
    %163 = vector.extract_strided_slice %160 {offsets = [0, 32], sizes = [8, 32], strides = [1, 1]} : vector<8x128xf32> to vector<8x32xf32>
    %164 = vector.extract_strided_slice %161 {offsets = [0, 64], sizes = [8, 32], strides = [1, 1]} : vector<8x128xf32> to vector<8x32xf32>
    %165 = vector.extract_strided_slice %160 {offsets = [0, 96], sizes = [8, 32], strides = [1, 1]} : vector<8x128xf32> to vector<8x32xf32>
    %166 = arith.mulf %163, %148 : vector<8x32xf32>
    %167 = arith.mulf %162, %164 : vector<8x32xf32>
    %168 = arith.addf %166, %167 : vector<8x32xf32>
    %169 = math.tanh %168 : vector<8x32xf32>
    %170 = arith.mulf %165, %169 : vector<8x32xf32>
    %171 = vector.extract_strided_slice %108 {offsets = [24, 0], sizes = [8, 128], strides = [1, 1]} : vector<32x128xf32> to vector<8x128xf32>
    %cst_57 = arith.constant dense<0.000000e+00> : vector<8x128xf32>
    %172 = tpu.matmul %170, %103, %cst_57 {dimension_numbers = #tpu.dot_dimension_numbers<[1], [0], [0], [1], [0, 0, 1, 1], [], []>} : vector<8x32xf32>, vector<32x128xf32>, vector<8x128xf32> -> vector<8x128xf32>
    %173 = arith.addf %171, %172 : vector<8x128xf32>
    %cst_58 = arith.constant 5.000000e-01 : f32
    %174 = vector.broadcast %cst_58 : f32 to vector<8x128xf32>
    %175 = arith.mulf %174, %173 : vector<8x128xf32>
    %176 = math.tanh %175 : vector<8x128xf32>
    %cst_59 = arith.constant 5.000000e-01 : f32
    %177 = vector.broadcast %cst_59 : f32 to vector<8x128xf32>
    %178 = arith.mulf %177, %176 : vector<8x128xf32>
    %cst_60 = arith.constant 5.000000e-01 : f32
    %179 = vector.broadcast %cst_60 : f32 to vector<8x128xf32>
    %180 = arith.addf %178, %179 : vector<8x128xf32>
    %181 = math.tanh %173 : vector<8x128xf32>
    %182 = vector.extract_strided_slice %180 {offsets = [0, 0], sizes = [8, 32], strides = [1, 1]} : vector<8x128xf32> to vector<8x32xf32>
    %183 = vector.extract_strided_slice %180 {offsets = [0, 32], sizes = [8, 32], strides = [1, 1]} : vector<8x128xf32> to vector<8x32xf32>
    %184 = vector.extract_strided_slice %181 {offsets = [0, 64], sizes = [8, 32], strides = [1, 1]} : vector<8x128xf32> to vector<8x32xf32>
    %185 = vector.extract_strided_slice %180 {offsets = [0, 96], sizes = [8, 32], strides = [1, 1]} : vector<8x128xf32> to vector<8x32xf32>
    %186 = arith.mulf %183, %168 : vector<8x32xf32>
    %187 = arith.mulf %182, %184 : vector<8x32xf32>
    %188 = arith.addf %186, %187 : vector<8x32xf32>
    %189 = math.tanh %188 : vector<8x32xf32>
    %190 = arith.mulf %185, %189 : vector<8x32xf32>
    %191 = tpu.concatenate %130, %150, %170, %190 in 0 : vector<8x32xf32>, vector<8x32xf32>, vector<8x32xf32>, vector<8x32xf32> -> vector<32x32xf32>
    %c2 = arith.constant 2 : index
    %c0_61 = arith.constant 0 : index
    %c0_62 = arith.constant 0 : index
    %192 = vector.load %arg3[%c2, %c0_61, %c0_62] : memref<4x32x128xf32, #tpu.memory_space<vmem>>, vector<1x32x128xf32>
    %193 = vector.shape_cast %192 : vector<1x32x128xf32> to vector<32x128xf32>
    %c2_63 = arith.constant 2 : index
    %c0_64 = arith.constant 0 : index
    %c0_65 = arith.constant 0 : index
    %194 = vector.load %arg4[%c2_63, %c0_64, %c0_65] : memref<4x32x128xf32, #tpu.memory_space<vmem>>, vector<1x32x128xf32>
    %195 = vector.shape_cast %194 : vector<1x32x128xf32> to vector<32x128xf32>
    %c2_66 = arith.constant 2 : index
    %c0_67 = arith.constant 0 : index
    %c0_68 = arith.constant 0 : index
    %196 = vector.load %arg5[%c2_66, %c0_67, %c0_68] : memref<4x1x128xf32, #tpu.memory_space<vmem>>, vector<1x1x128xf32>
    %197 = vector.shape_cast %196 : vector<1x1x128xf32> to vector<1x128xf32>
    %cst_69 = arith.constant dense<0.000000e+00> : vector<32x128xf32>
    %198 = tpu.matmul %191, %193, %cst_69 {dimension_numbers = #tpu.dot_dimension_numbers<[1], [0], [0], [1], [0, 0, 1, 1], [], []>} : vector<32x32xf32>, vector<32x128xf32>, vector<32x128xf32> -> vector<32x128xf32>
    %199 = vector.broadcast %197 : vector<1x128xf32> to vector<32x128xf32>
    %200 = arith.addf %198, %199 : vector<32x128xf32>
    %cst_70 = arith.constant 0.000000e+00 : f32
    %201 = vector.broadcast %cst_70 : f32 to vector<8x32xf32>
    %cst_71 = arith.constant 0.000000e+00 : f32
    %202 = vector.broadcast %cst_71 : f32 to vector<8x32xf32>
    %203 = vector.extract_strided_slice %200 {offsets = [0, 0], sizes = [8, 128], strides = [1, 1]} : vector<32x128xf32> to vector<8x128xf32>
    %cst_72 = arith.constant dense<0.000000e+00> : vector<8x128xf32>
    %204 = tpu.matmul %201, %195, %cst_72 {dimension_numbers = #tpu.dot_dimension_numbers<[1], [0], [0], [1], [0, 0, 1, 1], [], []>} : vector<8x32xf32>, vector<32x128xf32>, vector<8x128xf32> -> vector<8x128xf32>
    %205 = arith.addf %203, %204 : vector<8x128xf32>
    %cst_73 = arith.constant 5.000000e-01 : f32
    %206 = vector.broadcast %cst_73 : f32 to vector<8x128xf32>
    %207 = arith.mulf %206, %205 : vector<8x128xf32>
    %208 = math.tanh %207 : vector<8x128xf32>
    %cst_74 = arith.constant 5.000000e-01 : f32
    %209 = vector.broadcast %cst_74 : f32 to vector<8x128xf32>
    %210 = arith.mulf %209, %208 : vector<8x128xf32>
    %cst_75 = arith.constant 5.000000e-01 : f32
    %211 = vector.broadcast %cst_75 : f32 to vector<8x128xf32>
    %212 = arith.addf %210, %211 : vector<8x128xf32>
    %213 = math.tanh %205 : vector<8x128xf32>
    %214 = vector.extract_strided_slice %212 {offsets = [0, 0], sizes = [8, 32], strides = [1, 1]} : vector<8x128xf32> to vector<8x32xf32>
    %215 = vector.extract_strided_slice %212 {offsets = [0, 32], sizes = [8, 32], strides = [1, 1]} : vector<8x128xf32> to vector<8x32xf32>
    %216 = vector.extract_strided_slice %213 {offsets = [0, 64], sizes = [8, 32], strides = [1, 1]} : vector<8x128xf32> to vector<8x32xf32>
    %217 = vector.extract_strided_slice %212 {offsets = [0, 96], sizes = [8, 32], strides = [1, 1]} : vector<8x128xf32> to vector<8x32xf32>
    %218 = arith.mulf %215, %202 : vector<8x32xf32>
    %219 = arith.mulf %214, %216 : vector<8x32xf32>
    %220 = arith.addf %218, %219 : vector<8x32xf32>
    %221 = math.tanh %220 : vector<8x32xf32>
    %222 = arith.mulf %217, %221 : vector<8x32xf32>
    %223 = vector.extract_strided_slice %200 {offsets = [8, 0], sizes = [8, 128], strides = [1, 1]} : vector<32x128xf32> to vector<8x128xf32>
    %cst_76 = arith.constant dense<0.000000e+00> : vector<8x128xf32>
    %224 = tpu.matmul %222, %195, %cst_76 {dimension_numbers = #tpu.dot_dimension_numbers<[1], [0], [0], [1], [0, 0, 1, 1], [], []>} : vector<8x32xf32>, vector<32x128xf32>, vector<8x128xf32> -> vector<8x128xf32>
    %225 = arith.addf %223, %224 : vector<8x128xf32>
    %cst_77 = arith.constant 5.000000e-01 : f32
    %226 = vector.broadcast %cst_77 : f32 to vector<8x128xf32>
    %227 = arith.mulf %226, %225 : vector<8x128xf32>
    %228 = math.tanh %227 : vector<8x128xf32>
    %cst_78 = arith.constant 5.000000e-01 : f32
    %229 = vector.broadcast %cst_78 : f32 to vector<8x128xf32>
    %230 = arith.mulf %229, %228 : vector<8x128xf32>
    %cst_79 = arith.constant 5.000000e-01 : f32
    %231 = vector.broadcast %cst_79 : f32 to vector<8x128xf32>
    %232 = arith.addf %230, %231 : vector<8x128xf32>
    %233 = math.tanh %225 : vector<8x128xf32>
    %234 = vector.extract_strided_slice %232 {offsets = [0, 0], sizes = [8, 32], strides = [1, 1]} : vector<8x128xf32> to vector<8x32xf32>
    %235 = vector.extract_strided_slice %232 {offsets = [0, 32], sizes = [8, 32], strides = [1, 1]} : vector<8x128xf32> to vector<8x32xf32>
    %236 = vector.extract_strided_slice %233 {offsets = [0, 64], sizes = [8, 32], strides = [1, 1]} : vector<8x128xf32> to vector<8x32xf32>
    %237 = vector.extract_strided_slice %232 {offsets = [0, 96], sizes = [8, 32], strides = [1, 1]} : vector<8x128xf32> to vector<8x32xf32>
    %238 = arith.mulf %235, %220 : vector<8x32xf32>
    %239 = arith.mulf %234, %236 : vector<8x32xf32>
    %240 = arith.addf %238, %239 : vector<8x32xf32>
    %241 = math.tanh %240 : vector<8x32xf32>
    %242 = arith.mulf %237, %241 : vector<8x32xf32>
    %243 = vector.extract_strided_slice %200 {offsets = [16, 0], sizes = [8, 128], strides = [1, 1]} : vector<32x128xf32> to vector<8x128xf32>
    %cst_80 = arith.constant dense<0.000000e+00> : vector<8x128xf32>
    %244 = tpu.matmul %242, %195, %cst_80 {dimension_numbers = #tpu.dot_dimension_numbers<[1], [0], [0], [1], [0, 0, 1, 1], [], []>} : vector<8x32xf32>, vector<32x128xf32>, vector<8x128xf32> -> vector<8x128xf32>
    %245 = arith.addf %243, %244 : vector<8x128xf32>
    %cst_81 = arith.constant 5.000000e-01 : f32
    %246 = vector.broadcast %cst_81 : f32 to vector<8x128xf32>
    %247 = arith.mulf %246, %245 : vector<8x128xf32>
    %248 = math.tanh %247 : vector<8x128xf32>
    %cst_82 = arith.constant 5.000000e-01 : f32
    %249 = vector.broadcast %cst_82 : f32 to vector<8x128xf32>
    %250 = arith.mulf %249, %248 : vector<8x128xf32>
    %cst_83 = arith.constant 5.000000e-01 : f32
    %251 = vector.broadcast %cst_83 : f32 to vector<8x128xf32>
    %252 = arith.addf %250, %251 : vector<8x128xf32>
    %253 = math.tanh %245 : vector<8x128xf32>
    %254 = vector.extract_strided_slice %252 {offsets = [0, 0], sizes = [8, 32], strides = [1, 1]} : vector<8x128xf32> to vector<8x32xf32>
    %255 = vector.extract_strided_slice %252 {offsets = [0, 32], sizes = [8, 32], strides = [1, 1]} : vector<8x128xf32> to vector<8x32xf32>
    %256 = vector.extract_strided_slice %253 {offsets = [0, 64], sizes = [8, 32], strides = [1, 1]} : vector<8x128xf32> to vector<8x32xf32>
    %257 = vector.extract_strided_slice %252 {offsets = [0, 96], sizes = [8, 32], strides = [1, 1]} : vector<8x128xf32> to vector<8x32xf32>
    %258 = arith.mulf %255, %240 : vector<8x32xf32>
    %259 = arith.mulf %254, %256 : vector<8x32xf32>
    %260 = arith.addf %258, %259 : vector<8x32xf32>
    %261 = math.tanh %260 : vector<8x32xf32>
    %262 = arith.mulf %257, %261 : vector<8x32xf32>
    %263 = vector.extract_strided_slice %200 {offsets = [24, 0], sizes = [8, 128], strides = [1, 1]} : vector<32x128xf32> to vector<8x128xf32>
    %cst_84 = arith.constant dense<0.000000e+00> : vector<8x128xf32>
    %264 = tpu.matmul %262, %195, %cst_84 {dimension_numbers = #tpu.dot_dimension_numbers<[1], [0], [0], [1], [0, 0, 1, 1], [], []>} : vector<8x32xf32>, vector<32x128xf32>, vector<8x128xf32> -> vector<8x128xf32>
    %265 = arith.addf %263, %264 : vector<8x128xf32>
    %cst_85 = arith.constant 5.000000e-01 : f32
    %266 = vector.broadcast %cst_85 : f32 to vector<8x128xf32>
    %267 = arith.mulf %266, %265 : vector<8x128xf32>
    %268 = math.tanh %267 : vector<8x128xf32>
    %cst_86 = arith.constant 5.000000e-01 : f32
    %269 = vector.broadcast %cst_86 : f32 to vector<8x128xf32>
    %270 = arith.mulf %269, %268 : vector<8x128xf32>
    %cst_87 = arith.constant 5.000000e-01 : f32
    %271 = vector.broadcast %cst_87 : f32 to vector<8x128xf32>
    %272 = arith.addf %270, %271 : vector<8x128xf32>
    %273 = math.tanh %265 : vector<8x128xf32>
    %274 = vector.extract_strided_slice %272 {offsets = [0, 0], sizes = [8, 32], strides = [1, 1]} : vector<8x128xf32> to vector<8x32xf32>
    %275 = vector.extract_strided_slice %272 {offsets = [0, 32], sizes = [8, 32], strides = [1, 1]} : vector<8x128xf32> to vector<8x32xf32>
    %276 = vector.extract_strided_slice %273 {offsets = [0, 64], sizes = [8, 32], strides = [1, 1]} : vector<8x128xf32> to vector<8x32xf32>
    %277 = vector.extract_strided_slice %272 {offsets = [0, 96], sizes = [8, 32], strides = [1, 1]} : vector<8x128xf32> to vector<8x32xf32>
    %278 = arith.mulf %275, %260 : vector<8x32xf32>
    %279 = arith.mulf %274, %276 : vector<8x32xf32>
    %280 = arith.addf %278, %279 : vector<8x32xf32>
    %281 = math.tanh %280 : vector<8x32xf32>
    %282 = arith.mulf %277, %281 : vector<8x32xf32>
    %283 = tpu.concatenate %222, %242, %262, %282 in 0 : vector<8x32xf32>, vector<8x32xf32>, vector<8x32xf32>, vector<8x32xf32> -> vector<32x32xf32>
    %c3 = arith.constant 3 : index
    %c0_88 = arith.constant 0 : index
    %c0_89 = arith.constant 0 : index
    %284 = vector.load %arg3[%c3, %c0_88, %c0_89] : memref<4x32x128xf32, #tpu.memory_space<vmem>>, vector<1x32x128xf32>
    %285 = vector.shape_cast %284 : vector<1x32x128xf32> to vector<32x128xf32>
    %c3_90 = arith.constant 3 : index
    %c0_91 = arith.constant 0 : index
    %c0_92 = arith.constant 0 : index
    %286 = vector.load %arg4[%c3_90, %c0_91, %c0_92] : memref<4x32x128xf32, #tpu.memory_space<vmem>>, vector<1x32x128xf32>
    %287 = vector.shape_cast %286 : vector<1x32x128xf32> to vector<32x128xf32>
    %c3_93 = arith.constant 3 : index
    %c0_94 = arith.constant 0 : index
    %c0_95 = arith.constant 0 : index
    %288 = vector.load %arg5[%c3_93, %c0_94, %c0_95] : memref<4x1x128xf32, #tpu.memory_space<vmem>>, vector<1x1x128xf32>
    %289 = vector.shape_cast %288 : vector<1x1x128xf32> to vector<1x128xf32>
    %cst_96 = arith.constant dense<0.000000e+00> : vector<32x128xf32>
    %290 = tpu.matmul %283, %285, %cst_96 {dimension_numbers = #tpu.dot_dimension_numbers<[1], [0], [0], [1], [0, 0, 1, 1], [], []>} : vector<32x32xf32>, vector<32x128xf32>, vector<32x128xf32> -> vector<32x128xf32>
    %291 = vector.broadcast %289 : vector<1x128xf32> to vector<32x128xf32>
    %292 = arith.addf %290, %291 : vector<32x128xf32>
    %cst_97 = arith.constant 0.000000e+00 : f32
    %293 = vector.broadcast %cst_97 : f32 to vector<8x32xf32>
    %cst_98 = arith.constant 0.000000e+00 : f32
    %294 = vector.broadcast %cst_98 : f32 to vector<8x32xf32>
    %295 = vector.extract_strided_slice %292 {offsets = [0, 0], sizes = [8, 128], strides = [1, 1]} : vector<32x128xf32> to vector<8x128xf32>
    %cst_99 = arith.constant dense<0.000000e+00> : vector<8x128xf32>
    %296 = tpu.matmul %293, %287, %cst_99 {dimension_numbers = #tpu.dot_dimension_numbers<[1], [0], [0], [1], [0, 0, 1, 1], [], []>} : vector<8x32xf32>, vector<32x128xf32>, vector<8x128xf32> -> vector<8x128xf32>
    %297 = arith.addf %295, %296 : vector<8x128xf32>
    %cst_100 = arith.constant 5.000000e-01 : f32
    %298 = vector.broadcast %cst_100 : f32 to vector<8x128xf32>
    %299 = arith.mulf %298, %297 : vector<8x128xf32>
    %300 = math.tanh %299 : vector<8x128xf32>
    %cst_101 = arith.constant 5.000000e-01 : f32
    %301 = vector.broadcast %cst_101 : f32 to vector<8x128xf32>
    %302 = arith.mulf %301, %300 : vector<8x128xf32>
    %cst_102 = arith.constant 5.000000e-01 : f32
    %303 = vector.broadcast %cst_102 : f32 to vector<8x128xf32>
    %304 = arith.addf %302, %303 : vector<8x128xf32>
    %305 = math.tanh %297 : vector<8x128xf32>
    %306 = vector.extract_strided_slice %304 {offsets = [0, 0], sizes = [8, 32], strides = [1, 1]} : vector<8x128xf32> to vector<8x32xf32>
    %307 = vector.extract_strided_slice %304 {offsets = [0, 32], sizes = [8, 32], strides = [1, 1]} : vector<8x128xf32> to vector<8x32xf32>
    %308 = vector.extract_strided_slice %305 {offsets = [0, 64], sizes = [8, 32], strides = [1, 1]} : vector<8x128xf32> to vector<8x32xf32>
    %309 = vector.extract_strided_slice %304 {offsets = [0, 96], sizes = [8, 32], strides = [1, 1]} : vector<8x128xf32> to vector<8x32xf32>
    %310 = arith.mulf %307, %294 : vector<8x32xf32>
    %311 = arith.mulf %306, %308 : vector<8x32xf32>
    %312 = arith.addf %310, %311 : vector<8x32xf32>
    %313 = math.tanh %312 : vector<8x32xf32>
    %314 = arith.mulf %309, %313 : vector<8x32xf32>
    %315 = vector.extract_strided_slice %292 {offsets = [8, 0], sizes = [8, 128], strides = [1, 1]} : vector<32x128xf32> to vector<8x128xf32>
    %cst_103 = arith.constant dense<0.000000e+00> : vector<8x128xf32>
    %316 = tpu.matmul %314, %287, %cst_103 {dimension_numbers = #tpu.dot_dimension_numbers<[1], [0], [0], [1], [0, 0, 1, 1], [], []>} : vector<8x32xf32>, vector<32x128xf32>, vector<8x128xf32> -> vector<8x128xf32>
    %317 = arith.addf %315, %316 : vector<8x128xf32>
    %cst_104 = arith.constant 5.000000e-01 : f32
    %318 = vector.broadcast %cst_104 : f32 to vector<8x128xf32>
    %319 = arith.mulf %318, %317 : vector<8x128xf32>
    %320 = math.tanh %319 : vector<8x128xf32>
    %cst_105 = arith.constant 5.000000e-01 : f32
    %321 = vector.broadcast %cst_105 : f32 to vector<8x128xf32>
    %322 = arith.mulf %321, %320 : vector<8x128xf32>
    %cst_106 = arith.constant 5.000000e-01 : f32
    %323 = vector.broadcast %cst_106 : f32 to vector<8x128xf32>
    %324 = arith.addf %322, %323 : vector<8x128xf32>
    %325 = math.tanh %317 : vector<8x128xf32>
    %326 = vector.extract_strided_slice %324 {offsets = [0, 0], sizes = [8, 32], strides = [1, 1]} : vector<8x128xf32> to vector<8x32xf32>
    %327 = vector.extract_strided_slice %324 {offsets = [0, 32], sizes = [8, 32], strides = [1, 1]} : vector<8x128xf32> to vector<8x32xf32>
    %328 = vector.extract_strided_slice %325 {offsets = [0, 64], sizes = [8, 32], strides = [1, 1]} : vector<8x128xf32> to vector<8x32xf32>
    %329 = vector.extract_strided_slice %324 {offsets = [0, 96], sizes = [8, 32], strides = [1, 1]} : vector<8x128xf32> to vector<8x32xf32>
    %330 = arith.mulf %327, %312 : vector<8x32xf32>
    %331 = arith.mulf %326, %328 : vector<8x32xf32>
    %332 = arith.addf %330, %331 : vector<8x32xf32>
    %333 = math.tanh %332 : vector<8x32xf32>
    %334 = arith.mulf %329, %333 : vector<8x32xf32>
    %335 = vector.extract_strided_slice %292 {offsets = [16, 0], sizes = [8, 128], strides = [1, 1]} : vector<32x128xf32> to vector<8x128xf32>
    %cst_107 = arith.constant dense<0.000000e+00> : vector<8x128xf32>
    %336 = tpu.matmul %334, %287, %cst_107 {dimension_numbers = #tpu.dot_dimension_numbers<[1], [0], [0], [1], [0, 0, 1, 1], [], []>} : vector<8x32xf32>, vector<32x128xf32>, vector<8x128xf32> -> vector<8x128xf32>
    %337 = arith.addf %335, %336 : vector<8x128xf32>
    %cst_108 = arith.constant 5.000000e-01 : f32
    %338 = vector.broadcast %cst_108 : f32 to vector<8x128xf32>
    %339 = arith.mulf %338, %337 : vector<8x128xf32>
    %340 = math.tanh %339 : vector<8x128xf32>
    %cst_109 = arith.constant 5.000000e-01 : f32
    %341 = vector.broadcast %cst_109 : f32 to vector<8x128xf32>
    %342 = arith.mulf %341, %340 : vector<8x128xf32>
    %cst_110 = arith.constant 5.000000e-01 : f32
    %343 = vector.broadcast %cst_110 : f32 to vector<8x128xf32>
    %344 = arith.addf %342, %343 : vector<8x128xf32>
    %345 = math.tanh %337 : vector<8x128xf32>
    %346 = vector.extract_strided_slice %344 {offsets = [0, 0], sizes = [8, 32], strides = [1, 1]} : vector<8x128xf32> to vector<8x32xf32>
    %347 = vector.extract_strided_slice %344 {offsets = [0, 32], sizes = [8, 32], strides = [1, 1]} : vector<8x128xf32> to vector<8x32xf32>
    %348 = vector.extract_strided_slice %345 {offsets = [0, 64], sizes = [8, 32], strides = [1, 1]} : vector<8x128xf32> to vector<8x32xf32>
    %349 = vector.extract_strided_slice %344 {offsets = [0, 96], sizes = [8, 32], strides = [1, 1]} : vector<8x128xf32> to vector<8x32xf32>
    %350 = arith.mulf %347, %332 : vector<8x32xf32>
    %351 = arith.mulf %346, %348 : vector<8x32xf32>
    %352 = arith.addf %350, %351 : vector<8x32xf32>
    %353 = math.tanh %352 : vector<8x32xf32>
    %354 = arith.mulf %349, %353 : vector<8x32xf32>
    %355 = vector.extract_strided_slice %292 {offsets = [24, 0], sizes = [8, 128], strides = [1, 1]} : vector<32x128xf32> to vector<8x128xf32>
    %cst_111 = arith.constant dense<0.000000e+00> : vector<8x128xf32>
    %356 = tpu.matmul %354, %287, %cst_111 {dimension_numbers = #tpu.dot_dimension_numbers<[1], [0], [0], [1], [0, 0, 1, 1], [], []>} : vector<8x32xf32>, vector<32x128xf32>, vector<8x128xf32> -> vector<8x128xf32>
    %357 = arith.addf %355, %356 : vector<8x128xf32>
    %cst_112 = arith.constant 5.000000e-01 : f32
    %358 = vector.broadcast %cst_112 : f32 to vector<8x128xf32>
    %359 = arith.mulf %358, %357 : vector<8x128xf32>
    %360 = math.tanh %359 : vector<8x128xf32>
    %cst_113 = arith.constant 5.000000e-01 : f32
    %361 = vector.broadcast %cst_113 : f32 to vector<8x128xf32>
    %362 = arith.mulf %361, %360 : vector<8x128xf32>
    %cst_114 = arith.constant 5.000000e-01 : f32
    %363 = vector.broadcast %cst_114 : f32 to vector<8x128xf32>
    %364 = arith.addf %362, %363 : vector<8x128xf32>
    %365 = math.tanh %357 : vector<8x128xf32>
    %366 = vector.extract_strided_slice %364 {offsets = [0, 0], sizes = [8, 32], strides = [1, 1]} : vector<8x128xf32> to vector<8x32xf32>
    %367 = vector.extract_strided_slice %364 {offsets = [0, 32], sizes = [8, 32], strides = [1, 1]} : vector<8x128xf32> to vector<8x32xf32>
    %368 = vector.extract_strided_slice %365 {offsets = [0, 64], sizes = [8, 32], strides = [1, 1]} : vector<8x128xf32> to vector<8x32xf32>
    %369 = vector.extract_strided_slice %364 {offsets = [0, 96], sizes = [8, 32], strides = [1, 1]} : vector<8x128xf32> to vector<8x32xf32>
    %370 = arith.mulf %367, %352 : vector<8x32xf32>
    %371 = arith.mulf %366, %368 : vector<8x32xf32>
    %372 = arith.addf %370, %371 : vector<8x32xf32>
    %373 = math.tanh %372 : vector<8x32xf32>
    %374 = arith.mulf %369, %373 : vector<8x32xf32>
    %cst_115 = arith.constant 0.000000e+00 : f32
    %375 = vector.broadcast %cst_115 : f32 to vector<8x32xf32>
    %376 = arith.maximumf %374, %375 : vector<8x32xf32>
    %c0_116 = arith.constant 0 : index
    %c0_117 = arith.constant 0 : index
    %377 = vector.load %arg6[%c0_116, %c0_117] : memref<8x32xf32, #tpu.memory_space<vmem>>, vector<8x32xf32>
    tpu.vector_store %arg6[%c0_116, %c0_117], %376 {strides = array<i32>} : memref<8x32xf32, #tpu.memory_space<vmem>>, vector<8x32xf32>,
    return
  }
}

</mosaic_0001>

<llo_original>
// kernel: tpu_custom_call.1
$region0: #{tpu_custom_call.1}
  #allocation0 [shape = 'u32[]', space=smem, size = 0x4, offset = 0x4, fixed_abs, tag = 'smem constant byte address 0x4 - core index']
  #allocation1 [shape = 'u32[72,128]{1,0:T(1,128)}', space=vmem, size = 0x9000, scoped, tag = 'internal scratch']
  %s0 = inlined_call_operand.vmem [shape: f32[32,16], index: 0, kind: input, shape index: {}]
  %s1 = inlined_call_operand.vmem [shape: f32[16,32], index: 1, kind: input, shape index: {}]
  %s2 = inlined_call_operand.vmem [shape: f32[1,32], index: 2, kind: input, shape index: {}]
  %s3 = inlined_call_operand.hbm [shape: f32[4,32,128], index: 3, kind: input, shape index: {}]
  %s4 = inlined_call_operand.hbm [shape: f32[4,32,128], index: 4, kind: input, shape index: {}]
  %s5 = inlined_call_operand.vmem [shape: f32[4,1,128], index: 5, kind: input, shape index: {}]
  %s6 = inlined_call_operand.hbm [shape: f32[8,32], index: 6, kind: output, shape index: {}]
  %s7 = sld [smem:[#allocation0]]
  $region42: #{tpu_custom_call.1} parent=0
    _
  %s9 = ssub.s32 1, %s7
  %s10 = scalar_select 0, %s9, %s7
  $region1: #{tpu_custom_call.1} parent=0
    #allocation2 [shape = 'u8[65536]{0}', space=vmem, size = 0x10000, scoped, tag = 'input window, operand 3, single buffered']
    #allocation3 [shape = 's32[1]{0}', space=sflag, size = 0x4, scoped, tag = 'scoped memory for tpu_custom_call.1']
    #allocation4 [shape = 's32[1]{0}', space=sflag, size = 0x4, scoped, tag = 'scoped memory for tpu_custom_call.1']
    #allocation5 [shape = 'u8[65536]{0}', space=vmem, size = 0x10000, scoped, tag = 'input window, operand 4, single buffered']
    #allocation6 [shape = 's32[1]{0}', space=sflag, size = 0x4, scoped, tag = 'scoped memory for tpu_custom_call.1']
    #allocation7 [shape = 'u8[4096]{0}', space=vmem, size = 0x1000, scoped, tag = 'output window, operand 0, single buffered']
    %11 = vsyncpa [#allocation3], 0
    %12 = vsyncpa [#allocation6], 0
    %13 = vsyncpa [#allocation4], 0
    // Predicated region
    $region2: #{tpu_custom_call.1} parent=1 // pred_check
      _
    $region3: #{tpu_custom_call.1} parent=1 // pred_check_branch
      %15 = sbr.rel (0) target = $region5
    $region4: #{tpu_custom_call.1} parent=1 // pred_region
      _
    $region5: #{tpu_custom_call.1} parent=1 // pred_fallthru
      _
    // Predicated region
    $region6: #{tpu_custom_call.1} parent=1 // pred_check
      _
    $region7: #{tpu_custom_call.1} parent=1 // pred_check_branch
      %17 = sbr.rel (0) target = $region9
    $region8: #{tpu_custom_call.1} parent=1 // pred_region
      _
    $region9: #{tpu_custom_call.1} parent=1 // pred_fallthru
      _
    // Predicated region
    $region10: #{tpu_custom_call.1} parent=1 // pred_check
      _
    $region11: #{tpu_custom_call.1} parent=1 // pred_check_branch
      %19 = sbr.rel (0) target = $region13
    $region12: #{tpu_custom_call.1} parent=1 // pred_region
      _
    $region13: #{tpu_custom_call.1} parent=1 // pred_fallthru
      _
    // Predicated region
    $region14: #{tpu_custom_call.1} parent=1 // pred_check
      _
    $region15: #{tpu_custom_call.1} parent=1 // pred_check_branch
      %21 = sbr.rel (0) target = $region17
    $region16: #{tpu_custom_call.1} parent=1 // pred_region
      %23 = vsyncadd [#allocation3], 0
      %s24 = sshll.u32 %s3, 4
      %s25 = int_to_ptr.hbm [resolvable:$true] %s24
      %s26 = sshll.u32 [#allocation2], 4
      %s27 = int_to_ptr.vmem [resolvable:$true] %s26
      %32 = dma.hbm_to_vmem [thread:$0]  %s25, 2048, %s27, [#allocation3], 128, 128, 8
    $region17: #{tpu_custom_call.1} parent=1 // pred_fallthru
      _
    // Predicated region
    $region18: #{tpu_custom_call.1} parent=1 // pred_check
      _
    $region19: #{tpu_custom_call.1} parent=1 // pred_check_branch
      %34 = sbr.rel (0) target = $region21
    $region20: #{tpu_custom_call.1} parent=1 // pred_region
      %36 = vsyncadd [#allocation6], 0
      %s37 = sshll.u32 %s4, 4
      %s38 = int_to_ptr.hbm [resolvable:$true] %s37
      %s39 = sshll.u32 [#allocation5], 4
      %s40 = int_to_ptr.vmem [resolvable:$true] %s39
      %45 = dma.hbm_to_vmem [thread:$0]  %s38, 2048, %s40, [#allocation6], 128, 128, 8
    $region21: #{tpu_custom_call.1} parent=1 // pred_fallthru
      _
    // Predicated region
    $region22: #{tpu_custom_call.1} parent=1 // pred_check
      _
    $region23: #{tpu_custom_call.1} parent=1 // pred_check_branch
      %47 = sbr.rel (0) target = $region25
    $region24: #{tpu_custom_call.1} parent=1 // pred_region
      _
    $region25: #{tpu_custom_call.1} parent=1 // pred_fallthru
      _
    // Predicated region
    $region26: #{tpu_custom_call.1} parent=1 // pred_check
      _
    $region27: #{tpu_custom_call.1} parent=1 // pred_check_branch
      %49 = sbr.rel (0) target = $region29
    $region28: #{tpu_custom_call.1} parent=1 // pred_region
      %51 = dma.done [#allocation3], 2048
    $region29: #{tpu_custom_call.1} parent=1 // pred_fallthru
      _
    // Predicated region
    $region30: #{tpu_custom_call.1} parent=1 // pred_check
      _
    $region31: #{tpu_custom_call.1} parent=1 // pred_check_branch
      %53 = sbr.rel (0) target = $region33
    $region32: #{tpu_custom_call.1} parent=1 // pred_region
      %55 = dma.done [#allocation6], 2048
    $region33: #{tpu_custom_call.1} parent=1 // pred_fallthru
      _
    %v56 = vld [vmem:[%s0] sm:$0xff]
    %v57 = vld [vmem:[%s0 + $0x8] sm:$0xff]
    %v58 = vld [vmem:[%s0 + $0x10] sm:$0xff]
    %v59 = vld [vmem:[%s0 + $0x18] sm:$0xff]
    %v60 = vld [vmem:[%s1] sm:$0xff]
    %v61 = vld [vmem:[%s1 + $0x8] sm:$0xff]
    %v62 = vld [vmem:[%s2] sm:$0x1]
    %v64 = vperm.slane %v62, 0
    %vm66 = vcmask 130048
    %v68 = vsel %vm66, %v56, 0
    %v71 = vsel %vm66, %v57, 0
    %v74 = vsel %vm66, %v58, 0
    %v77 = vsel %vm66, %v59, 0
    %79 = vmatpush.msra.mxu0 0.0
    %80 = vmatpush.msra.mxu0 0.0
    %81 = vmatpush.msra.mxu0 0.0
    %82 = vmatpush.msra.mxu0 0.0
    %83 = vmatpush.msra.mxu0 0.0
    %84 = vmatpush.msra.mxu0 0.0
    %85 = vmatpush.msra.mxu0 0.0
    %86 = vmatpush.msra.mxu0 0.0
    %87 = vmatpush.msra.mxu0 0.0
    %88 = vmatpush.msra.mxu0 0.0
    %89 = vmatpush.msra.mxu0 0.0
    %90 = vmatpush.msra.mxu0 0.0
    %91 = vmatpush.msra.mxu0 0.0
    %92 = vmatpush.msra.mxu0 0.0
    %93 = vmatpush.msra.mxu0 %v61
    %94 = vmatpush.msra.mxu0 %v60
    %95 = vmatmul.f32.gmra.mxu0 %v68
    %v96 = vpop.f32.mrf.mxu0
    %v97 = vadd.f32 %v64, %v96
    %98 = vmatmul.f32.gmra.mxu0 %v71
    %v99 = vpop.f32.mrf.mxu0
    %v100 = vadd.f32 %v64, %v99
    %101 = vmatmul.f32.gmra.mxu0 %v74
    %v102 = vpop.f32.mrf.mxu0
    %v103 = vadd.f32 %v64, %v102
    %104 = vmatmul.f32.gmra.mxu0 %v77
    %v105 = vpop.f32.mrf.mxu0
    %v106 = vadd.f32 %v64, %v105
    %107 = vdwg.mxu0
    %v108 = vmax.f32 %v97, 0.0
    %v109 = vmax.f32 %v100, 0.0
    %v110 = vmax.f32 %v103, 0.0
    %v111 = vmax.f32 %v106, 0.0
    %v112 = vld [vmem:[#allocation2] sm:$0xff]
    %v113 = vld [vmem:[#allocation2 + $0x8] sm:$0xff]
    %v114 = vld [vmem:[#allocation2 + $0x10] sm:$0xff]
    %v115 = vld [vmem:[#allocation2 + $0x18] sm:$0xff]
    %v116 = vld [vmem:[#allocation5] sm:$0xff]
    %v117 = vld [vmem:[#allocation5 + $0x8] sm:$0xff]
    %v118 = vld [vmem:[#allocation5 + $0x10] sm:$0xff]
    %v119 = vld [vmem:[#allocation5 + $0x18] sm:$0xff]
    %v120 = vld [vmem:[%s5] sm:$0x1]
    %v122 = vperm.slane %v120, 0
    %vm124 = vcmask 261120
    %v126 = vsel %vm124, %v108, 0
    %v129 = vsel %vm124, %v109, 0
    %v132 = vsel %vm124, %v110, 0
    %v135 = vsel %vm124, %v111, 0
    %137 = vmatpush.msra.mxu0 0.0
    %138 = vmatpush.msra.mxu0 0.0
    %139 = vmatpush.msra.mxu0 0.0
    %140 = vmatpush.msra.mxu0 0.0
    %141 = vmatpush.msra.mxu0 0.0
    %142 = vmatpush.msra.mxu0 0.0
    %143 = vmatpush.msra.mxu0 0.0
    %144 = vmatpush.msra.mxu0 0.0
    %145 = vmatpush.msra.mxu0 0.0
    %146 = vmatpush.msra.mxu0 0.0
    %147 = vmatpush.msra.mxu0 0.0
    %148 = vmatpush.msra.mxu0 0.0
    %149 = vmatpush.msra.mxu0 %v115
    %150 = vmatpush.msra.mxu0 %v114
    %151 = vmatpush.msra.mxu0 %v113
    %152 = vmatpush.msra.mxu0 %v112
    %153 = vmatmul.f32.gmra.mxu0 %v126
    %v154 = vpop.f32.mrf.mxu0
    %v155 = vadd.f32 %v122, %v154
    %156 = vmatmul.f32.gmra.mxu0 %v129
    %v157 = vpop.f32.mrf.mxu0
    %v158 = vadd.f32 %v122, %v157
    %159 = vmatmul.f32.gmra.mxu0 %v132
    %v160 = vpop.f32.mrf.mxu0
    %v161 = vadd.f32 %v122, %v160
    %162 = vmatmul.f32.gmra.mxu0 %v135
    %v163 = vpop.f32.mrf.mxu0
    %v164 = vadd.f32 %v122, %v163
    %165 = vdwg.mxu0
    %v167 = vsel %vm124, 0.0, 0
    %169 = vmatpush.msra.mxu0 0.0
    %170 = vmatpush.msra.mxu0 0.0
    %171 = vmatpush.msra.mxu0 0.0
    %172 = vmatpush.msra.mxu0 0.0
    %173 = vmatpush.msra.mxu0 0.0
    %174 = vmatpush.msra.mxu0 0.0
    %175 = vmatpush.msra.mxu0 0.0
    %176 = vmatpush.msra.mxu0 0.0
    %177 = vmatpush.msra.mxu0 0.0
    %178 = vmatpush.msra.mxu0 0.0
    %179 = vmatpush.msra.mxu0 0.0
    %180 = vmatpush.msra.mxu0 0.0
    %181 = vmatpush.msra.mxu0 %v119
    %182 = vmatpush.msra.mxu0 %v118
    %183 = vmatpush.msra.mxu0 %v117
    %184 = vmatpush.msra.mxu0 %v116
    %185 = vmatmul.f32.gmra.mxu0 %v167
    %v186 = vpop.f32.mrf.mxu0
    %v187 = vadd.f32 0.0, %v186
    %188 = vdwg.mxu0
    %v189 = vadd.f32 %v155, %v187
    %v190 = vmul.f32 %v189, 0.5
    %v191 = vtanh.pop %v190
    %v192 = vmul.f32 %v191, 0.5
    %v193 = vadd.f32 %v192, 0.5
    %v194 = vtanh.pop %v189
    %v195 = vmul.f32 %v193, 0.0
    %197 = vrot.lane.b32.xlu0 %v194, 64
    %v198 = vpop.permute.xlu0 %197
    %v200 = vmul.f32 %v193, %v198
    %202 = vrot.lane.b32.xlu0 %v200, 32
    %v203 = vpop.permute.xlu0 %202
    %v205 = vadd.f32 %v195, %v203
    %v206 = vtanh.pop %v205
    %208 = vrot.lane.b32.xlu0 %v206, 64
    %v209 = vpop.permute.xlu0 %208
    %v211 = vmul.f32 %v193, %v209
    %213 = vrot.lane.b32.xlu0 %v211, 32
    %v214 = vpop.permute.xlu0 %213
    %v215 = vsel %vm124, %v214, 0
    %217 = vmatpush.msra.mxu0 0.0
    %218 = vmatpush.msra.mxu0 0.0
    %219 = vmatpush.msra.mxu0 0.0
    %220 = vmatpush.msra.mxu0 0.0
    %221 = vmatpush.msra.mxu0 0.0
    %222 = vmatpush.msra.mxu0 0.0
    %223 = vmatpush.msra.mxu0 0.0
    %224 = vmatpush.msra.mxu0 0.0
    %225 = vmatpush.msra.mxu0 0.0
    %226 = vmatpush.msra.mxu0 0.0
    %227 = vmatpush.msra.mxu0 0.0
    %228 = vmatpush.msra.mxu0 0.0
    %229 = vmatpush.msra.mxu0 %v119
    %230 = vmatpush.msra.mxu0 %v118
    %231 = vmatpush.msra.mxu0 %v117
    %232 = vmatpush.msra.mxu0 %v116
    %233 = vmatmul.f32.gmra.mxu0 %v215
    %v234 = vpop.f32.mrf.mxu0
    %v235 = vadd.f32 0.0, %v234
    %236 = vdwg.mxu0
    %v237 = vadd.f32 %v158, %v235
    %v238 = vmul.f32 %v237, 0.5
    %v239 = vtanh.pop %v238
    %v240 = vmul.f32 %v239, 0.5
    %v241 = vadd.f32 %v240, 0.5
    %v242 = vtanh.pop %v237
    %v243 = vmul.f32 %v241, %v205
    %245 = vrot.lane.b32.xlu0 %v242, 64
    %v246 = vpop.permute.xlu0 %245
    %v248 = vmul.f32 %v241, %v246
    %250 = vrot.lane.b32.xlu0 %v248, 32
    %v251 = vpop.permute.xlu0 %250
    %v253 = vadd.f32 %v243, %v251
    %v254 = vtanh.pop %v253
    %256 = vrot.lane.b32.xlu0 %v254, 64
    %v257 = vpop.permute.xlu0 %256
    %v259 = vmul.f32 %v241, %v257
    %261 = vrot.lane.b32.xlu0 %v259, 32
    %v262 = vpop.permute.xlu0 %261
    %v263 = vsel %vm124, %v262, 0
    %265 = vmatpush.msra.mxu0 0.0
    %266 = vmatpush.msra.mxu0 0.0
    %267 = vmatpush.msra.mxu0 0.0
    %268 = vmatpush.msra.mxu0 0.0
    %269 = vmatpush.msra.mxu0 0.0
    %270 = vmatpush.msra.mxu0 0.0
    %271 = vmatpush.msra.mxu0 0.0
    %272 = vmatpush.msra.mxu0 0.0
    %273 = vmatpush.msra.mxu0 0.0
    %274 = vmatpush.msra.mxu0 0.0
    %275 = vmatpush.msra.mxu0 0.0
    %276 = vmatpush.msra.mxu0 0.0
    %277 = vmatpush.msra.mxu0 %v119
    %278 = vmatpush.msra.mxu0 %v118
    %279 = vmatpush.msra.mxu0 %v117
    %280 = vmatpush.msra.mxu0 %v116
    %281 = vmatmul.f32.gmra.mxu0 %v263
    %v282 = vpop.f32.mrf.mxu0
    %v283 = vadd.f32 0.0, %v282
    %284 = vdwg.mxu0
    %v285 = vadd.f32 %v161, %v283
    %v286 = vmul.f32 %v285, 0.5
    %v287 = vtanh.pop %v286
    %v288 = vmul.f32 %v287, 0.5
    %v289 = vadd.f32 %v288, 0.5
    %v290 = vtanh.pop %v285
    %v291 = vmul.f32 %v289, %v253
    %293 = vrot.lane.b32.xlu0 %v290, 64
    %v294 = vpop.permute.xlu0 %293
    %v296 = vmul.f32 %v289, %v294
    %298 = vrot.lane.b32.xlu0 %v296, 32
    %v299 = vpop.permute.xlu0 %298
    %v301 = vadd.f32 %v291, %v299
    %v302 = vtanh.pop %v301
    %304 = vrot.lane.b32.xlu0 %v302, 64
    %v305 = vpop.permute.xlu0 %304
    %v307 = vmul.f32 %v289, %v305
    %309 = vrot.lane.b32.xlu0 %v307, 32
    %v310 = vpop.permute.xlu0 %309
    %v311 = vsel %vm124, %v310, 0
    %313 = vmatpush.msra.mxu0 0.0
    %314 = vmatpush.msra.mxu0 0.0
    %315 = vmatpush.msra.mxu0 0.0
    %316 = vmatpush.msra.mxu0 0.0
    %317 = vmatpush.msra.mxu0 0.0
    %318 = vmatpush.msra.mxu0 0.0
    %319 = vmatpush.msra.mxu0 0.0
    %320 = vmatpush.msra.mxu0 0.0
    %321 = vmatpush.msra.mxu0 0.0
    %322 = vmatpush.msra.mxu0 0.0
    %323 = vmatpush.msra.mxu0 0.0
    %324 = vmatpush.msra.mxu0 0.0
    %325 = vmatpush.msra.mxu0 %v119
    %326 = vmatpush.msra.mxu0 %v118
    %327 = vmatpush.msra.mxu0 %v117
    %328 = vmatpush.msra.mxu0 %v116
    %329 = vmatmul.f32.gmra.mxu0 %v311
    %v330 = vpop.f32.mrf.mxu0
    %v331 = vadd.f32 0.0, %v330
    %332 = vdwg.mxu0
    %v333 = vadd.f32 %v164, %v331
    %v334 = vmul.f32 %v333, 0.5
    %v335 = vtanh.pop %v334
    %v336 = vmul.f32 %v335, 0.5
    %v337 = vadd.f32 %v336, 0.5
    %v338 = vtanh.pop %v333
    %v339 = vmul.f32 %v337, %v301
    %341 = vrot.lane.b32.xlu0 %v338, 64
    %v342 = vpop.permute.xlu0 %341
    %v344 = vmul.f32 %v337, %v342
    %346 = vrot.lane.b32.xlu0 %v344, 32
    %v347 = vpop.permute.xlu0 %346
    %v349 = vadd.f32 %v339, %v347
    %v350 = vtanh.pop %v349
    %352 = vrot.lane.b32.xlu0 %v350, 64
    %v353 = vpop.permute.xlu0 %352
    %v355 = vmul.f32 %v337, %v353
    %s356 = scalar_lea.vmem [#allocation2], 32
    %v357 = vld [vmem:[%s356] sm:$0xff]
    %v358 = vld [vmem:[%s356 + $0x8] sm:$0xff]
    %v359 = vld [vmem:[%s356 + $0x10] sm:$0xff]
    %v360 = vld [vmem:[%s356 + $0x18] sm:$0xff]
    %s361 = scalar_lea.vmem [#allocation5], 32
    %v362 = vld [vmem:[%s361] sm:$0xff]
    %v363 = vld [vmem:[%s361 + $0x8] sm:$0xff]
    %v364 = vld [vmem:[%s361 + $0x10] sm:$0xff]
    %v365 = vld [vmem:[%s361 + $0x18] sm:$0xff]
    %s366 = scalar_lea.vmem %s5, 1
    %v367 = vld [vmem:[%s366] sm:$0x1]
    %v369 = vperm.slane %v367, 0
    %372 = vrot.lane.b32.xlu0 %v355, 32
    %v373 = vpop.permute.xlu0 %372
    %v374 = vsel %vm124, %v373, 0
    %376 = vmatpush.msra.mxu0 0.0
    %377 = vmatpush.msra.mxu0 0.0
    %378 = vmatpush.msra.mxu0 0.0
    %379 = vmatpush.msra.mxu0 0.0
    %380 = vmatpush.msra.mxu0 0.0
    %381 = vmatpush.msra.mxu0 0.0
    %382 = vmatpush.msra.mxu0 0.0
    %383 = vmatpush.msra.mxu0 0.0
    %384 = vmatpush.msra.mxu0 0.0
    %385 = vmatpush.msra.mxu0 0.0
    %386 = vmatpush.msra.mxu0 0.0
    %387 = vmatpush.msra.mxu0 0.0
    %388 = vmatpush.msra.mxu0 %v360
    %389 = vmatpush.msra.mxu0 %v359
    %390 = vmatpush.msra.mxu0 %v358
    %391 = vmatpush.msra.mxu0 %v357
    %392 = vmatmul.f32.gmra.mxu0 %v215
    %v393 = vpop.f32.mrf.mxu0
    %v394 = vadd.f32 %v369, %v393
    %395 = vmatmul.f32.gmra.mxu0 %v263
    %v396 = vpop.f32.mrf.mxu0
    %v397 = vadd.f32 %v369, %v396
    %398 = vmatmul.f32.gmra.mxu0 %v311
    %v399 = vpop.f32.mrf.mxu0
    %v400 = vadd.f32 %v369, %v399
    %401 = vmatmul.f32.gmra.mxu0 %v374
    %v402 = vpop.f32.mrf.mxu0
    %v403 = vadd.f32 %v369, %v402
    %404 = vdwg.mxu0
    %405 = vmatpush.msra.mxu0 0.0
    %406 = vmatpush.msra.mxu0 0.0
    %407 = vmatpush.msra.mxu0 0.0
    %408 = vmatpush.msra.mxu0 0.0
    %409 = vmatpush.msra.mxu0 0.0
    %410 = vmatpush.msra.mxu0 0.0
    %411 = vmatpush.msra.mxu0 0.0
    %412 = vmatpush.msra.mxu0 0.0
    %413 = vmatpush.msra.mxu0 0.0
    %414 = vmatpush.msra.mxu0 0.0
    %415 = vmatpush.msra.mxu0 0.0
    %416 = vmatpush.msra.mxu0 0.0
    %417 = vmatpush.msra.mxu0 %v365
    %418 = vmatpush.msra.mxu0 %v364
    %419 = vmatpush.msra.mxu0 %v363
    %420 = vmatpush.msra.mxu0 %v362
    %421 = vmatmul.f32.gmra.mxu0 %v167
    %v422 = vpop.f32.mrf.mxu0
    %v423 = vadd.f32 0.0, %v422
    %424 = vdwg.mxu0
    %v425 = vadd.f32 %v394, %v423
    %v426 = vmul.f32 %v425, 0.5
    %v427 = vtanh.pop %v426
    %v428 = vmul.f32 %v427, 0.5
    %v429 = vadd.f32 %v428, 0.5
    %v430 = vtanh.pop %v425
    %v431 = vmul.f32 %v429, 0.0
    %433 = vrot.lane.b32.xlu0 %v430, 64
    %v434 = vpop.permute.xlu0 %433
    %v436 = vmul.f32 %v429, %v434
    %438 = vrot.lane.b32.xlu0 %v436, 32
    %v439 = vpop.permute.xlu0 %438
    %v441 = vadd.f32 %v431, %v439
    %v442 = vtanh.pop %v441
    %444 = vrot.lane.b32.xlu0 %v442, 64
    %v445 = vpop.permute.xlu0 %444
    %v447 = vmul.f32 %v429, %v445
    %449 = vrot.lane.b32.xlu0 %v447, 32
    %v450 = vpop.permute.xlu0 %449
    %v451 = vsel %vm124, %v450, 0
    %453 = vmatpush.msra.mxu0 0.0
    %454 = vmatpush.msra.mxu0 0.0
    %455 = vmatpush.msra.mxu0 0.0
    %456 = vmatpush.msra.mxu0 0.0
    %457 = vmatpush.msra.mxu0 0.0
    %458 = vmatpush.msra.mxu0 0.0
    %459 = vmatpush.msra.mxu0 0.0
    %460 = vmatpush.msra.mxu0 0.0
    %461 = vmatpush.msra.mxu0 0.0
    %462 = vmatpush.msra.mxu0 0.0
    %463 = vmatpush.msra.mxu0 0.0
    %464 = vmatpush.msra.mxu0 0.0
    %465 = vmatpush.msra.mxu0 %v365
    %466 = vmatpush.msra.mxu0 %v364
    %467 = vmatpush.msra.mxu0 %v363
    %468 = vmatpush.msra.mxu0 %v362
    %469 = vmatmul.f32.gmra.mxu0 %v451
    %v470 = vpop.f32.mrf.mxu0
    %v471 = vadd.f32 0.0, %v470
    %472 = vdwg.mxu0
    %v473 = vadd.f32 %v397, %v471
    %v474 = vmul.f32 %v473, 0.5
    %v475 = vtanh.pop %v474
    %v476 = vmul.f32 %v475, 0.5
    %v477 = vadd.f32 %v476, 0.5
    %v478 = vtanh.pop %v473
    %v479 = vmul.f32 %v477, %v441
    %481 = vrot.lane.b32.xlu0 %v478, 64
    %v482 = vpop.permute.xlu0 %481
    %v484 = vmul.f32 %v477, %v482
    %486 = vrot.lane.b32.xlu0 %v484, 32
    %v487 = vpop.permute.xlu0 %486
    %v489 = vadd.f32 %v479, %v487
    %v490 = vtanh.pop %v489
    %492 = vrot.lane.b32.xlu0 %v490, 64
    %v493 = vpop.permute.xlu0 %492
    %v495 = vmul.f32 %v477, %v493
    %497 = vrot.lane.b32.xlu0 %v495, 32
    %v498 = vpop.permute.xlu0 %497
    %v499 = vsel %vm124, %v498, 0
    %501 = vmatpush.msra.mxu0 0.0
    %502 = vmatpush.msra.mxu0 0.0
    %503 = vmatpush.msra.mxu0 0.0
    %504 = vmatpush.msra.mxu0 0.0
    %505 = vmatpush.msra.mxu0 0.0
    %506 = vmatpush.msra.mxu0 0.0
    %507 = vmatpush.msra.mxu0 0.0
    %508 = vmatpush.msra.mxu0 0.0
    %509 = vmatpush.msra.mxu0 0.0
    %510 = vmatpush.msra.mxu0 0.0
    %511 = vmatpush.msra.mxu0 0.0
    %512 = vmatpush.msra.mxu0 0.0
    %513 = vmatpush.msra.mxu0 %v365
    %514 = vmatpush.msra.mxu0 %v364
    %515 = vmatpush.msra.mxu0 %v363
    %516 = vmatpush.msra.mxu0 %v362
    %517 = vmatmul.f32.gmra.mxu0 %v499
    %v518 = vpop.f32.mrf.mxu0
    %v519 = vadd.f32 0.0, %v518
    %520 = vdwg.mxu0
    %v521 = vadd.f32 %v400, %v519
    %v522 = vmul.f32 %v521, 0.5
    %v523 = vtanh.pop %v522
    %v524 = vmul.f32 %v523, 0.5
    %v525 = vadd.f32 %v524, 0.5
    %v526 = vtanh.pop %v521
    %v527 = vmul.f32 %v525, %v489
    %529 = vrot.lane.b32.xlu0 %v526, 64
    %v530 = vpop.permute.xlu0 %529
    %v532 = vmul.f32 %v525, %v530
    %534 = vrot.lane.b32.xlu0 %v532, 32
    %v535 = vpop.permute.xlu0 %534
    %v537 = vadd.f32 %v527, %v535
    %v538 = vtanh.pop %v537
    %540 = vrot.lane.b32.xlu0 %v538, 64
    %v541 = vpop.permute.xlu0 %540
    %v543 = vmul.f32 %v525, %v541
    %545 = vrot.lane.b32.xlu0 %v543, 32
    %v546 = vpop.permute.xlu0 %545
    %v547 = vsel %vm124, %v546, 0
    %549 = vmatpush.msra.mxu0 0.0
    %550 = vmatpush.msra.mxu0 0.0
    %551 = vmatpush.msra.mxu0 0.0
    %552 = vmatpush.msra.mxu0 0.0
    %553 = vmatpush.msra.mxu0 0.0
    %554 = vmatpush.msra.mxu0 0.0
    %555 = vmatpush.msra.mxu0 0.0
    %556 = vmatpush.msra.mxu0 0.0
    %557 = vmatpush.msra.mxu0 0.0
    %558 = vmatpush.msra.mxu0 0.0
    %559 = vmatpush.msra.mxu0 0.0
    %560 = vmatpush.msra.mxu0 0.0
    %561 = vmatpush.msra.mxu0 %v365
    %562 = vmatpush.msra.mxu0 %v364
    %563 = vmatpush.msra.mxu0 %v363
    %564 = vmatpush.msra.mxu0 %v362
    %565 = vmatmul.f32.gmra.mxu0 %v547
    %v566 = vpop.f32.mrf.mxu0
    %v567 = vadd.f32 0.0, %v566
    %568 = vdwg.mxu0
    %v569 = vadd.f32 %v403, %v567
    %v570 = vmul.f32 %v569, 0.5
    %v571 = vtanh.pop %v570
    %v572 = vmul.f32 %v571, 0.5
    %v573 = vadd.f32 %v572, 0.5
    %v574 = vtanh.pop %v569
    %v575 = vmul.f32 %v573, %v537
    %577 = vrot.lane.b32.xlu0 %v574, 64
    %v578 = vpop.permute.xlu0 %577
    %v580 = vmul.f32 %v573, %v578
    %582 = vrot.lane.b32.xlu0 %v580, 32
    %v583 = vpop.permute.xlu0 %582
    %v585 = vadd.f32 %v575, %v583
    %v586 = vtanh.pop %v585
    %588 = vrot.lane.b32.xlu0 %v586, 64
    %v589 = vpop.permute.xlu0 %588
    %v591 = vmul.f32 %v573, %v589
    %s592 = scalar_lea.vmem [#allocation2], 64
    %v593 = vld [vmem:[%s592] sm:$0xff]
    %v594 = vld [vmem:[%s592 + $0x8] sm:$0xff]
    %v595 = vld [vmem:[%s592 + $0x10] sm:$0xff]
    %v596 = vld [vmem:[%s592 + $0x18] sm:$0xff]
    %s597 = scalar_lea.vmem [#allocation5], 64
    %v598 = vld [vmem:[%s597] sm:$0xff]
    %v599 = vld [vmem:[%s597 + $0x8] sm:$0xff]
    %v600 = vld [vmem:[%s597 + $0x10] sm:$0xff]
    %v601 = vld [vmem:[%s597 + $0x18] sm:$0xff]
    %s602 = scalar_lea.vmem %s5, 2
    %v603 = vld [vmem:[%s602] sm:$0x1]
    %v605 = vperm.slane %v603, 0
    %608 = vrot.lane.b32.xlu0 %v591, 32
    %v609 = vpop.permute.xlu0 %608
    %v610 = vsel %vm124, %v609, 0
    %612 = vmatpush.msra.mxu0 0.0
    %613 = vmatpush.msra.mxu0 0.0
    %614 = vmatpush.msra.mxu0 0.0
    %615 = vmatpush.msra.mxu0 0.0
    %616 = vmatpush.msra.mxu0 0.0
    %617 = vmatpush.msra.mxu0 0.0
    %618 = vmatpush.msra.mxu0 0.0
    %619 = vmatpush.msra.mxu0 0.0
    %620 = vmatpush.msra.mxu0 0.0
    %621 = vmatpush.msra.mxu0 0.0
    %622 = vmatpush.msra.mxu0 0.0
    %623 = vmatpush.msra.mxu0 0.0
    %624 = vmatpush.msra.mxu0 %v596
    %625 = vmatpush.msra.mxu0 %v595
    %626 = vmatpush.msra.mxu0 %v594
    %627 = vmatpush.msra.mxu0 %v593
    %628 = vmatmul.f32.gmra.mxu0 %v451
    %v629 = vpop.f32.mrf.mxu0
    %v630 = vadd.f32 %v605, %v629
    %631 = vmatmul.f32.gmra.mxu0 %v499
    %v632 = vpop.f32.mrf.mxu0
    %v633 = vadd.f32 %v605, %v632
    %634 = vmatmul.f32.gmra.mxu0 %v547
    %v635 = vpop.f32.mrf.mxu0
    %v636 = vadd.f32 %v605, %v635
    %637 = vmatmul.f32.gmra.mxu0 %v610
    %v638 = vpop.f32.mrf.mxu0
    %v639 = vadd.f32 %v605, %v638
    %640 = vdwg.mxu0
    %641 = vmatpush.msra.mxu0 0.0
    %642 = vmatpush.msra.mxu0 0.0
    %643 = vmatpush.msra.mxu0 0.0
    %644 = vmatpush.msra.mxu0 0.0
    %645 = vmatpush.msra.mxu0 0.0
    %646 = vmatpush.msra.mxu0 0.0
    %647 = vmatpush.msra.mxu0 0.0
    %648 = vmatpush.msra.mxu0 0.0
    %649 = vmatpush.msra.mxu0 0.0
    %650 = vmatpush.msra.mxu0 0.0
    %651 = vmatpush.msra.mxu0 0.0
    %652 = vmatpush.msra.mxu0 0.0
    %653 = vmatpush.msra.mxu0 %v601
    %654 = vmatpush.msra.mxu0 %v600
    %655 = vmatpush.msra.mxu0 %v599
    %656 = vmatpush.msra.mxu0 %v598
    %657 = vmatmul.f32.gmra.mxu0 %v167
    %v658 = vpop.f32.mrf.mxu0
    %v659 = vadd.f32 0.0, %v658
    %660 = vdwg.mxu0
    %v661 = vadd.f32 %v630, %v659
    %v662 = vmul.f32 %v661, 0.5
    %v663 = vtanh.pop %v662
    %v664 = vmul.f32 %v663, 0.5
    %v665 = vadd.f32 %v664, 0.5
    %v666 = vtanh.pop %v661
    %v667 = vmul.f32 %v665, 0.0
    %669 = vrot.lane.b32.xlu0 %v666, 64
    %v670 = vpop.permute.xlu0 %669
    %v672 = vmul.f32 %v665, %v670
    %674 = vrot.lane.b32.xlu0 %v672, 32
    %v675 = vpop.permute.xlu0 %674
    %v677 = vadd.f32 %v667, %v675
    %v678 = vtanh.pop %v677
    %680 = vrot.lane.b32.xlu0 %v678, 64
    %v681 = vpop.permute.xlu0 %680
    %v683 = vmul.f32 %v665, %v681
    %685 = vrot.lane.b32.xlu0 %v683, 32
    %v686 = vpop.permute.xlu0 %685
    %v687 = vsel %vm124, %v686, 0
    %689 = vmatpush.msra.mxu0 0.0
    %690 = vmatpush.msra.mxu0 0.0
    %691 = vmatpush.msra.mxu0 0.0
    %692 = vmatpush.msra.mxu0 0.0
    %693 = vmatpush.msra.mxu0 0.0
    %694 = vmatpush.msra.mxu0 0.0
    %695 = vmatpush.msra.mxu0 0.0
    %696 = vmatpush.msra.mxu0 0.0
    %697 = vmatpush.msra.mxu0 0.0
    %698 = vmatpush.msra.mxu0 0.0
    %699 = vmatpush.msra.mxu0 0.0
    %700 = vmatpush.msra.mxu0 0.0
    %701 = vmatpush.msra.mxu0 %v601
    %702 = vmatpush.msra.mxu0 %v600
    %703 = vmatpush.msra.mxu0 %v599
    %704 = vmatpush.msra.mxu0 %v598
    %705 = vmatmul.f32.gmra.mxu0 %v687
    %v706 = vpop.f32.mrf.mxu0
    %v707 = vadd.f32 0.0, %v706
    %708 = vdwg.mxu0
    %v709 = vadd.f32 %v633, %v707
    %v710 = vmul.f32 %v709, 0.5
    %v711 = vtanh.pop %v710
    %v712 = vmul.f32 %v711, 0.5
    %v713 = vadd.f32 %v712, 0.5
    %v714 = vtanh.pop %v709
    %v715 = vmul.f32 %v713, %v677
    %717 = vrot.lane.b32.xlu0 %v714, 64
    %v718 = vpop.permute.xlu0 %717
    %v720 = vmul.f32 %v713, %v718
    %722 = vrot.lane.b32.xlu0 %v720, 32
    %v723 = vpop.permute.xlu0 %722
    %v725 = vadd.f32 %v715, %v723
    %v726 = vtanh.pop %v725
    %728 = vrot.lane.b32.xlu0 %v726, 64
    %v729 = vpop.permute.xlu0 %728
    %v731 = vmul.f32 %v713, %v729
    %733 = vrot.lane.b32.xlu0 %v731, 32
    %v734 = vpop.permute.xlu0 %733
    %v735 = vsel %vm124, %v734, 0
    %737 = vmatpush.msra.mxu0 0.0
    %738 = vmatpush.msra.mxu0 0.0
    %739 = vmatpush.msra.mxu0 0.0
    %740 = vmatpush.msra.mxu0 0.0
    %741 = vmatpush.msra.mxu0 0.0
    %742 = vmatpush.msra.mxu0 0.0
    %743 = vmatpush.msra.mxu0 0.0
    %744 = vmatpush.msra.mxu0 0.0
    %745 = vmatpush.msra.mxu0 0.0
    %746 = vmatpush.msra.mxu0 0.0
    %747 = vmatpush.msra.mxu0 0.0
    %748 = vmatpush.msra.mxu0 0.0
    %749 = vmatpush.msra.mxu0 %v601
    %750 = vmatpush.msra.mxu0 %v600
    %751 = vmatpush.msra.mxu0 %v599
    %752 = vmatpush.msra.mxu0 %v598
    %753 = vmatmul.f32.gmra.mxu0 %v735
    %v754 = vpop.f32.mrf.mxu0
    %v755 = vadd.f32 0.0, %v754
    %756 = vdwg.mxu0
    %v757 = vadd.f32 %v636, %v755
    %v758 = vmul.f32 %v757, 0.5
    %v759 = vtanh.pop %v758
    %v760 = vmul.f32 %v759, 0.5
    %v761 = vadd.f32 %v760, 0.5
    %v762 = vtanh.pop %v757
    %v763 = vmul.f32 %v761, %v725
    %765 = vrot.lane.b32.xlu0 %v762, 64
    %v766 = vpop.permute.xlu0 %765
    %v768 = vmul.f32 %v761, %v766
    %770 = vrot.lane.b32.xlu0 %v768, 32
    %v771 = vpop.permute.xlu0 %770
    %v773 = vadd.f32 %v763, %v771
    %v774 = vtanh.pop %v773
    %776 = vrot.lane.b32.xlu0 %v774, 64
    %v777 = vpop.permute.xlu0 %776
    %v779 = vmul.f32 %v761, %v777
    %781 = vrot.lane.b32.xlu0 %v779, 32
    %v782 = vpop.permute.xlu0 %781
    %v783 = vsel %vm124, %v782, 0
    %785 = vmatpush.msra.mxu0 0.0
    %786 = vmatpush.msra.mxu0 0.0
    %787 = vmatpush.msra.mxu0 0.0
    %788 = vmatpush.msra.mxu0 0.0
    %789 = vmatpush.msra.mxu0 0.0
    %790 = vmatpush.msra.mxu0 0.0
    %791 = vmatpush.msra.mxu0 0.0
    %792 = vmatpush.msra.mxu0 0.0
    %793 = vmatpush.msra.mxu0 0.0
    %794 = vmatpush.msra.mxu0 0.0
    %795 = vmatpush.msra.mxu0 0.0
    %796 = vmatpush.msra.mxu0 0.0
    %797 = vmatpush.msra.mxu0 %v601
    %798 = vmatpush.msra.mxu0 %v600
    %799 = vmatpush.msra.mxu0 %v599
    %800 = vmatpush.msra.mxu0 %v598
    %801 = vmatmul.f32.gmra.mxu0 %v783
    %v802 = vpop.f32.mrf.mxu0
    %v803 = vadd.f32 0.0, %v802
    %804 = vdwg.mxu0
    %v805 = vadd.f32 %v639, %v803
    %v806 = vmul.f32 %v805, 0.5
    %v807 = vtanh.pop %v806
    %v808 = vmul.f32 %v807, 0.5
    %v809 = vadd.f32 %v808, 0.5
    %v810 = vtanh.pop %v805
    %v811 = vmul.f32 %v809, %v773
    %813 = vrot.lane.b32.xlu0 %v810, 64
    %v814 = vpop.permute.xlu0 %813
    %v816 = vmul.f32 %v809, %v814
    %818 = vrot.lane.b32.xlu0 %v816, 32
    %v819 = vpop.permute.xlu0 %818
    %v821 = vadd.f32 %v811, %v819
    %v822 = vtanh.pop %v821
    %824 = vrot.lane.b32.xlu0 %v822, 64
    %v825 = vpop.permute.xlu0 %824
    %v827 = vmul.f32 %v809, %v825
    %s828 = scalar_lea.vmem [#allocation2], 96
    %v829 = vld [vmem:[%s828] sm:$0xff]
    %v830 = vld [vmem:[%s828 + $0x8] sm:$0xff]
    %v831 = vld [vmem:[%s828 + $0x10] sm:$0xff]
    %v832 = vld [vmem:[%s828 + $0x18] sm:$0xff]
    %s833 = scalar_lea.vmem [#allocation5], 96
    %v834 = vld [vmem:[%s833] sm:$0xff]
    %v835 = vld [vmem:[%s833 + $0x8] sm:$0xff]
    %v836 = vld [vmem:[%s833 + $0x10] sm:$0xff]
    %v837 = vld [vmem:[%s833 + $0x18] sm:$0xff]
    %s838 = scalar_lea.vmem %s5, 3
    %v839 = vld [vmem:[%s838] sm:$0x1]
    %v841 = vperm.slane %v839, 0
    %844 = vrot.lane.b32.xlu0 %v827, 32
    %v845 = vpop.permute.xlu0 %844
    %v846 = vsel %vm124, %v845, 0
    %848 = vmatpush.msra.mxu0 0.0
    %849 = vmatpush.msra.mxu0 0.0
    %850 = vmatpush.msra.mxu0 0.0
    %851 = vmatpush.msra.mxu0 0.0
    %852 = vmatpush.msra.mxu0 0.0
    %853 = vmatpush.msra.mxu0 0.0
    %854 = vmatpush.msra.mxu0 0.0
    %855 = vmatpush.msra.mxu0 0.0
    %856 = vmatpush.msra.mxu0 0.0
    %857 = vmatpush.msra.mxu0 0.0
    %858 = vmatpush.msra.mxu0 0.0
    %859 = vmatpush.msra.mxu0 0.0
    %860 = vmatpush.msra.mxu0 %v832
    %861 = vmatpush.msra.mxu0 %v831
    %862 = vmatpush.msra.mxu0 %v830
    %863 = vmatpush.msra.mxu0 %v829
    %864 = vmatmul.f32.gmra.mxu0 %v687
    %v865 = vpop.f32.mrf.mxu0
    %v866 = vadd.f32 %v841, %v865
    %867 = vmatmul.f32.gmra.mxu0 %v735
    %v868 = vpop.f32.mrf.mxu0
    %v869 = vadd.f32 %v841, %v868
    %870 = vmatmul.f32.gmra.mxu0 %v783
    %v871 = vpop.f32.mrf.mxu0
    %v872 = vadd.f32 %v841, %v871
    %873 = vmatmul.f32.gmra.mxu0 %v846
    %v874 = vpop.f32.mrf.mxu0
    %v875 = vadd.f32 %v841, %v874
    %876 = vdwg.mxu0
    %877 = vmatpush.msra.mxu0 0.0
    %878 = vmatpush.msra.mxu0 0.0
    %879 = vmatpush.msra.mxu0 0.0
    %880 = vmatpush.msra.mxu0 0.0
    %881 = vmatpush.msra.mxu0 0.0
    %882 = vmatpush.msra.mxu0 0.0
    %883 = vmatpush.msra.mxu0 0.0
    %884 = vmatpush.msra.mxu0 0.0
    %885 = vmatpush.msra.mxu0 0.0
    %886 = vmatpush.msra.mxu0 0.0
    %887 = vmatpush.msra.mxu0 0.0
    %888 = vmatpush.msra.mxu0 0.0
    %889 = vmatpush.msra.mxu0 %v837
    %890 = vmatpush.msra.mxu0 %v836
    %891 = vmatpush.msra.mxu0 %v835
    %892 = vmatpush.msra.mxu0 %v834
    %893 = vmatmul.f32.gmra.mxu0 %v167
    %v894 = vpop.f32.mrf.mxu0
    %v895 = vadd.f32 0.0, %v894
    %896 = vdwg.mxu0
    %v897 = vadd.f32 %v866, %v895
    %v898 = vmul.f32 %v897, 0.5
    %v899 = vtanh.pop %v898
    %v900 = vmul.f32 %v899, 0.5
    %v901 = vadd.f32 %v900, 0.5
    %v902 = vtanh.pop %v897
    %v903 = vmul.f32 %v901, 0.0
    %905 = vrot.lane.b32.xlu0 %v902, 64
    %v906 = vpop.permute.xlu0 %905
    %v908 = vmul.f32 %v901, %v906
    %910 = vrot.lane.b32.xlu0 %v908, 32
    %v911 = vpop.permute.xlu0 %910
    %v913 = vadd.f32 %v903, %v911
    %v914 = vtanh.pop %v913
    %916 = vrot.lane.b32.xlu0 %v914, 64
    %v917 = vpop.permute.xlu0 %916
    %v919 = vmul.f32 %v901, %v917
    %921 = vrot.lane.b32.xlu0 %v919, 32
    %v922 = vpop.permute.xlu0 %921
    %v923 = vsel %vm124, %v922, 0
    %925 = vmatpush.msra.mxu0 0.0
    %926 = vmatpush.msra.mxu0 0.0
    %927 = vmatpush.msra.mxu0 0.0
    %928 = vmatpush.msra.mxu0 0.0
    %929 = vmatpush.msra.mxu0 0.0
    %930 = vmatpush.msra.mxu0 0.0
    %931 = vmatpush.msra.mxu0 0.0
    %932 = vmatpush.msra.mxu0 0.0
    %933 = vmatpush.msra.mxu0 0.0
    %934 = vmatpush.msra.mxu0 0.0
    %935 = vmatpush.msra.mxu0 0.0
    %936 = vmatpush.msra.mxu0 0.0
    %937 = vmatpush.msra.mxu0 %v837
    %938 = vmatpush.msra.mxu0 %v836
    %939 = vmatpush.msra.mxu0 %v835
    %940 = vmatpush.msra.mxu0 %v834
    %941 = vmatmul.f32.gmra.mxu0 %v923
    %v942 = vpop.f32.mrf.mxu0
    %v943 = vadd.f32 0.0, %v942
    %944 = vdwg.mxu0
    %v945 = vadd.f32 %v869, %v943
    %v946 = vmul.f32 %v945, 0.5
    %v947 = vtanh.pop %v946
    %v948 = vmul.f32 %v947, 0.5
    %v949 = vadd.f32 %v948, 0.5
    %v950 = vtanh.pop %v945
    %v951 = vmul.f32 %v949, %v913
    %953 = vrot.lane.b32.xlu0 %v950, 64
    %v954 = vpop.permute.xlu0 %953
    %v956 = vmul.f32 %v949, %v954
    %958 = vrot.lane.b32.xlu0 %v956, 32
    %v959 = vpop.permute.xlu0 %958
    %v961 = vadd.f32 %v951, %v959
    %v962 = vtanh.pop %v961
    %964 = vrot.lane.b32.xlu0 %v962, 64
    %v965 = vpop.permute.xlu0 %964
    %v967 = vmul.f32 %v949, %v965
    %969 = vrot.lane.b32.xlu0 %v967, 32
    %v970 = vpop.permute.xlu0 %969
    %v971 = vsel %vm124, %v970, 0
    %973 = vmatpush.msra.mxu0 0.0
    %974 = vmatpush.msra.mxu0 0.0
    %975 = vmatpush.msra.mxu0 0.0
    %976 = vmatpush.msra.mxu0 0.0
    %977 = vmatpush.msra.mxu0 0.0
    %978 = vmatpush.msra.mxu0 0.0
    %979 = vmatpush.msra.mxu0 0.0
    %980 = vmatpush.msra.mxu0 0.0
    %981 = vmatpush.msra.mxu0 0.0
    %982 = vmatpush.msra.mxu0 0.0
    %983 = vmatpush.msra.mxu0 0.0
    %984 = vmatpush.msra.mxu0 0.0
    %985 = vmatpush.msra.mxu0 %v837
    %986 = vmatpush.msra.mxu0 %v836
    %987 = vmatpush.msra.mxu0 %v835
    %988 = vmatpush.msra.mxu0 %v834
    %989 = vmatmul.f32.gmra.mxu0 %v971
    %v990 = vpop.f32.mrf.mxu0
    %v991 = vadd.f32 0.0, %v990
    %992 = vdwg.mxu0
    %v993 = vadd.f32 %v872, %v991
    %v994 = vmul.f32 %v993, 0.5
    %v995 = vtanh.pop %v994
    %v996 = vmul.f32 %v995, 0.5
    %v997 = vadd.f32 %v996, 0.5
    %v998 = vtanh.pop %v993
    %v999 = vmul.f32 %v997, %v961
    %1001 = vrot.lane.b32.xlu0 %v998, 64
    %v1002 = vpop.permute.xlu0 %1001
    %v1004 = vmul.f32 %v997, %v1002
    %1006 = vrot.lane.b32.xlu0 %v1004, 32
    %v1007 = vpop.permute.xlu0 %1006
    %v1009 = vadd.f32 %v999, %v1007
    %v1010 = vtanh.pop %v1009
    %1012 = vrot.lane.b32.xlu0 %v1010, 64
    %v1013 = vpop.permute.xlu0 %1012
    %v1015 = vmul.f32 %v997, %v1013
    %1017 = vrot.lane.b32.xlu0 %v1015, 32
    %v1018 = vpop.permute.xlu0 %1017
    %v1019 = vsel %vm124, %v1018, 0
    %1021 = vmatpush.msra.mxu0 0.0
    %1022 = vmatpush.msra.mxu0 0.0
    %1023 = vmatpush.msra.mxu0 0.0
    %1024 = vmatpush.msra.mxu0 0.0
    %1025 = vmatpush.msra.mxu0 0.0
    %1026 = vmatpush.msra.mxu0 0.0
    %1027 = vmatpush.msra.mxu0 0.0
    %1028 = vmatpush.msra.mxu0 0.0
    %1029 = vmatpush.msra.mxu0 0.0
    %1030 = vmatpush.msra.mxu0 0.0
    %1031 = vmatpush.msra.mxu0 0.0
    %1032 = vmatpush.msra.mxu0 0.0
    %1033 = vmatpush.msra.mxu0 %v837
    %1034 = vmatpush.msra.mxu0 %v836
    %1035 = vmatpush.msra.mxu0 %v835
    %1036 = vmatpush.msra.mxu0 %v834
    %1037 = vmatmul.f32.gmra.mxu0 %v1019
    %v1038 = vpop.f32.mrf.mxu0
    %v1039 = vadd.f32 0.0, %v1038
    %1040 = vdwg.mxu0
    %v1041 = vadd.f32 %v875, %v1039
    %v1042 = vmul.f32 %v1041, 0.5
    %v1043 = vtanh.pop %v1042
    %v1044 = vmul.f32 %v1043, 0.5
    %v1045 = vadd.f32 %v1044, 0.5
    %v1046 = vtanh.pop %v1041
    %v1047 = vmul.f32 %v1045, %v1009
    %1049 = vrot.lane.b32.xlu0 %v1046, 64
    %v1050 = vpop.permute.xlu0 %1049
    %v1052 = vmul.f32 %v1045, %v1050
    %1054 = vrot.lane.b32.xlu0 %v1052, 32
    %v1055 = vpop.permute.xlu0 %1054
    %v1057 = vadd.f32 %v1047, %v1055
    %v1058 = vtanh.pop %v1057
    %1060 = vrot.lane.b32.xlu0 %v1058, 64
    %v1061 = vpop.permute.xlu0 %1060
    %v1063 = vmul.f32 %v1045, %v1061
    %v1064 = vmax.f32 %v1063, 0.0
    %1066 = vrot.lane.b32.xlu0 %v1064, 32
    %v1067 = vpop.permute.xlu0 %1066
    %1069 = vst.msk [vmem:[#allocation7] sm:$0xff] %vm124, %v1067
    // Predicated region
    $region34: #{tpu_custom_call.1} parent=1 // pred_check
      _
    $region35: #{tpu_custom_call.1} parent=1 // pred_check_branch
      %1071 = sbr.rel (0) target = $region37
    $region36: #{tpu_custom_call.1} parent=1 // pred_region
      %1073 = vsyncadd [#allocation4], 0
      %s1075 = sshll.u32 [#allocation7], 4
      %s1076 = int_to_ptr.vmem [resolvable:$true] %s1075
      %s1077 = sshll.u32 %s6, 4
      %s1078 = int_to_ptr.hbm [resolvable:$true] %s1077
      %1080 = dma.vmem_to_hbm [thread:$0]  %s1076, 128, %s1078, [#allocation4]
    $region37: #{tpu_custom_call.1} parent=1 // pred_fallthru
      _
    // Predicated region
    $region38: #{tpu_custom_call.1} parent=1 // pred_check
      _
    $region39: #{tpu_custom_call.1} parent=1 // pred_check_branch
      %1082 = sbr.rel (0) target = $region41
    $region40: #{tpu_custom_call.1} parent=1 // pred_region
      %1084 = dma.done [#allocation4], 128
    $region41: #{tpu_custom_call.1} parent=1 // pred_fallthru
      _
    %1085 = vsyncpa [#allocation3], 1
    %1086 = vsyncpa [#allocation6], 1
    %1087 = vsyncpa [#allocation4], 1

</llo_original>
